<compile_context>
chip_gen: v6e
topology: v6e:2x2x1
jax: 0.10.0
libtpu: 0.0.40
codegen_flags: <defaults>
</compile_context>

<pallas_src>
import functools

import jax
import jax.numpy as jnp
from jax.experimental import pallas as pl
from jax.experimental.pallas import tpu as pltpu

EPS = 1e-3


def _conv_bn_kernel(x_ref, w_ref, gamma_ref, beta_ref, o_ref, *, inv_m):
    # x_ref:      [CK, M]    Cin-slice of the activations
    # w_ref:      [Cout, CK] matching Cin-slice of the 1x1 conv weight
    # gamma/beta: [Cout, 1]
    # o_ref:      [Cout, M]  resident accumulator / final output
    k = pl.program_id(0)
    nk = pl.num_programs(0)

    @pl.when(k == 0)
    def _init():
        o_ref[...] = jnp.zeros_like(o_ref)

    # 1x1 conv == matmul on the MXU, accumulated over Cin tiles (f32 accumulation).
    o_ref[...] += jnp.dot(w_ref[...], x_ref[...], preferred_element_type=jnp.float32)

    @pl.when(k == nk - 1)
    def _finalize():
        y = o_ref[...]                                     # [Cout, M]
        # One pass: sum and sum-of-squares (lane reductions -> XLU, free slots).
        s = jnp.sum(y, axis=1, keepdims=True)              # [Cout, 1]
        ss = jnp.sum(y * y, axis=1, keepdims=True)         # [Cout, 1]
        mean = s * inv_m
        var = ss * inv_m - mean * mean                     # biased (training-mode) variance
        # Fold BN into a single per-channel scale/shift -> 2 VPU ops per element.
        scale = jax.lax.rsqrt(var + EPS) * gamma_ref[...]  # [Cout, 1]
        shift = beta_ref[...] - mean * scale               # [Cout, 1]
        o_ref[...] = y * scale + shift


def conv2d_batchnorm(x_nchw, w_oihw, gamma, beta):
    """x_nchw: [N, Cin, H, W] f32; w_oihw: [Cout, Cin, 1, 1]; gamma/beta: [Cout]."""
    N, Cin, H, W = x_nchw.shape
    Cout = w_oihw.shape[0]
    M = N * H * W

    # [Cin, M] layout: for N == 1 (this module), NCHW is already [Cin, H*W] -> free reshape.
    if N == 1:
        x_cm = x_nchw.reshape(Cin, M)
    else:
        x_cm = jnp.transpose(x_nchw, (1, 0, 2, 3)).reshape(Cin, M)
    w_oc = w_oihw.reshape(Cout, Cin)        # [Cout, Cin], exactly the layout the kernel wants
    g = gamma.reshape(Cout, 1)
    b = beta.reshape(Cout, 1)

    # Tile the Cin reduction axis (384 = 3 * 128) so the x DMA pipelines with the MXU.
    CK = 128 if (Cin % 128 == 0 and Cin > 128) else Cin
    nk = Cin // CK

    kernel = functools.partial(_conv_bn_kernel, inv_m=1.0 / M)

    cost = pl.CostEstimate(
        flops=2 * M * Cin * Cout + 8 * M * Cout,
        transcendentals=Cout,
        bytes_accessed=4 * (M * Cin + Cin * Cout + M * Cout + 2 * Cout),
    )

    out_cm = pl.pallas_call(
        kernel,
        out_shape=jax.ShapeDtypeStruct((Cout, M), jnp.float32),
        grid_spec=pltpu.PrefetchScalarGridSpec(
            num_scalar_prefetch=0,
            grid=(nk,),
            in_specs=[
                pl.BlockSpec((CK, M), lambda k: (k, 0)),      # x   [Cin, M]  -> Cin-tiled
                pl.BlockSpec((Cout, CK), lambda k: (0, k)),   # w   [Cout, Cin] -> Cin-tiled
                pl.BlockSpec((Cout, 1), lambda k: (0, 0)),    # gamma
                pl.BlockSpec((Cout, 1), lambda k: (0, 0)),    # beta
            ],
            out_specs=pl.BlockSpec((Cout, M), lambda k: (0, 0)),  # resident accumulator
        ),
        compiler_params=pltpu.CompilerParams(
            dimension_semantics=("arbitrary",),   # reduction axis (output revisited)
        ),
        cost_estimate=cost,
    )(x_cm, w_oc, g, b)

    # [Cout, M] -> NCHW (free reshape for N == 1).
    if N == 1:
        return out_cm.reshape(1, Cout, H, W)
    return jnp.transpose(out_cm.reshape(Cout, N, H, W), (1, 0, 2, 3))


def reference(x_nchw, w_oihw, gamma, beta):
    N, Cin, H, W = x_nchw.shape
    Cout = w_oihw.shape[0]
    x_flat = jnp.transpose(x_nchw, (0, 2, 3, 1)).reshape(-1, Cin)
    w = jnp.transpose(w_oihw.reshape(Cout, Cin), (1, 0))
    y = x_flat @ w
    mean = jnp.mean(y, axis=0, keepdims=True)
    var = jnp.mean((y - mean) ** 2, axis=0, keepdims=True)
    yn = (y - mean) / jnp.sqrt(var + EPS) * gamma[None, :] + beta[None, :]
    return jnp.transpose(yn.reshape(N, H, W, Cout), (0, 3, 1, 2))


if __name__ == "__main__":
    key = jax.random.PRNGKey(0)
    kx, kw, kg, kb = jax.random.split(key, 4)

    N, Cin, H, W = 1, 384, 28, 28
    Cout = 96

    x = jax.random.normal(kx, (N, Cin, H, W), dtype=jnp.float32)
    w = jax.random.normal(kw, (Cout, Cin, 1, 1), dtype=jnp.float32) * (1.0 / (Cin ** 0.5))
    gamma = jax.random.normal(kg, (Cout,), dtype=jnp.float32) * 0.1 + 1.0
    beta = jax.random.normal(kb, (Cout,), dtype=jnp.float32) * 0.1

    out = conv2d_batchnorm(x, w, gamma, beta)
    out = jax.block_until_ready(out)

    ref = reference(x, w, gamma, beta)
    assert out.shape == (N, Cout, H, W), out.shape
    assert jnp.allclose(out, ref, atol=1e-4, rtol=1e-4), float(jnp.max(jnp.abs(out - ref)))

    print("KERNEL_OK")
</pallas_src>

<mosaic_0001>
module attributes {stable_mosaic.version = 11 : i64} {
  func.func @_conv_bn_kernel(%arg0: i32, %arg1: memref<128x784xf32, #tpu.memory_space<vmem>>, %arg2: memref<96x128xf32, #tpu.memory_space<vmem>>, %arg3: memref<96x1xf32, #tpu.memory_space<vmem>>, %arg4: memref<96x1xf32, #tpu.memory_space<vmem>>, %arg5: memref<96x784xf32, #tpu.memory_space<vmem>>) attributes {dimension_semantics = [#tpu.dimension_semantics<arbitrary>], iteration_bounds = array<i64: 3>, scalar_prefetch = 0 : i64, scratch_operands = 0 : i64, tpu.core_type = #tpu.core_type<tc>, window_params = [{transform_indices = @transform_0, window_bounds = array<i64: 128, 784>}, {transform_indices = @transform_1, window_bounds = array<i64: 96, 128>}, {pipeline_mode = #tpu.pipeline_mode<synchronous>, transform_indices = @transform_2, window_bounds = array<i64: 96, 1>}, {pipeline_mode = #tpu.pipeline_mode<synchronous>, transform_indices = @transform_3, window_bounds = array<i64: 96, 1>}, {pipeline_mode = #tpu.pipeline_mode<synchronous>, transform_indices = @transform_4, window_bounds = array<i64: 96, 784>}]} {
    %c0_i32 = arith.constant 0 : i32
    %0 = arith.cmpi eq, %arg0, %c0_i32 : i32
    %1 = arith.extui %0 : i1 to i32
    %c0_i32_0 = arith.constant 0 : i32
    %2 = arith.cmpi ne, %1, %c0_i32_0 : i32
    scf.if %2 {
      %cst_9 = arith.constant 0.000000e+00 : f32
      %12 = vector.broadcast %cst_9 : f32 to vector<96x784xf32>
      %c0_10 = arith.constant 0 : index
      %c0_11 = arith.constant 0 : index
      %13 = vector.load %arg5[%c0_10, %c0_11] : memref<96x784xf32, #tpu.memory_space<vmem>>, vector<96x784xf32>
      tpu.vector_store %arg5[%c0_10, %c0_11], %12 {strides = array<i32>} : memref<96x784xf32, #tpu.memory_space<vmem>>, vector<96x784xf32>,
    } else {
    }
    %c0 = arith.constant 0 : index
    %c0_1 = arith.constant 0 : index
    %3 = vector.load %arg5[%c0, %c0_1] : memref<96x784xf32, #tpu.memory_space<vmem>>, vector<96x784xf32>
    %c0_2 = arith.constant 0 : index
    %c0_3 = arith.constant 0 : index
    %4 = vector.load %arg2[%c0_2, %c0_3] : memref<96x128xf32, #tpu.memory_space<vmem>>, vector<96x128xf32>
    %c0_4 = arith.constant 0 : index
    %c0_5 = arith.constant 0 : index
    %5 = vector.load %arg1[%c0_4, %c0_5] : memref<128x784xf32, #tpu.memory_space<vmem>>, vector<128x784xf32>
    %cst = arith.constant dense<0.000000e+00> : vector<96x784xf32>
    %6 = tpu.matmul %4, %5, %cst {dimension_numbers = #tpu.dot_dimension_numbers<[1], [0], [0], [1], [0, 0, 1, 1], [], []>} : vector<96x128xf32>, vector<128x784xf32>, vector<96x784xf32> -> vector<96x784xf32>
    %7 = arith.addf %3, %6 : vector<96x784xf32>
    %c0_6 = arith.constant 0 : index
    %c0_7 = arith.constant 0 : index
    %8 = vector.load %arg5[%c0_6, %c0_7] : memref<96x784xf32, #tpu.memory_space<vmem>>, vector<96x784xf32>
    tpu.vector_store %arg5[%c0_6, %c0_7], %7 {strides = array<i32>} : memref<96x784xf32, #tpu.memory_space<vmem>>, vector<96x784xf32>,
    %c2_i32 = arith.constant 2 : i32
    %9 = arith.cmpi eq, %arg0, %c2_i32 : i32
    %10 = arith.extui %9 : i1 to i32
    %c0_i32_8 = arith.constant 0 : i32
    %11 = arith.cmpi ne, %10, %c0_i32_8 : i32
    scf.if %11 {
      %c0_9 = arith.constant 0 : index
      %c0_10 = arith.constant 0 : index
      %12 = vector.load %arg5[%c0_9, %c0_10] : memref<96x784xf32, #tpu.memory_space<vmem>>, vector<96x784xf32>
      %cst_11 = arith.constant dense<0.000000e+00> : vector<96xf32>
      %13 = vector.multi_reduction <add>, %12, %cst_11 [1] : vector<96x784xf32> to vector<96xf32>
      %14 = vector.shape_cast %13 : vector<96xf32> to vector<96x1xf32>
      %15 = arith.mulf %12, %12 : vector<96x784xf32>
      %cst_12 = arith.constant dense<0.000000e+00> : vector<96xf32>
      %16 = vector.multi_reduction <add>, %15, %cst_12 [1] : vector<96x784xf32> to vector<96xf32>
      %17 = vector.shape_cast %16 : vector<96xf32> to vector<96x1xf32>
      %cst_13 = arith.constant 0.00127551018 : f32
      %18 = vector.broadcast %cst_13 : f32 to vector<96x1xf32>
      %19 = arith.mulf %14, %18 : vector<96x1xf32>
      %cst_14 = arith.constant 0.00127551018 : f32
      %20 = vector.broadcast %cst_14 : f32 to vector<96x1xf32>
      %21 = arith.mulf %17, %20 : vector<96x1xf32>
      %22 = arith.mulf %19, %19 : vector<96x1xf32>
      %23 = arith.subf %21, %22 : vector<96x1xf32>
      %cst_15 = arith.constant 1.000000e-03 : f32
      %24 = vector.broadcast %cst_15 : f32 to vector<96x1xf32>
      %25 = arith.addf %23, %24 : vector<96x1xf32>
      %26 = math.rsqrt %25 : vector<96x1xf32>
      %c0_16 = arith.constant 0 : index
      %c0_17 = arith.constant 0 : index
      %27 = vector.load %arg3[%c0_16, %c0_17] : memref<96x1xf32, #tpu.memory_space<vmem>>, vector<96x1xf32>
      %28 = arith.mulf %26, %27 : vector<96x1xf32>
      %c0_18 = arith.constant 0 : index
      %c0_19 = arith.constant 0 : index
      %29 = vector.load %arg4[%c0_18, %c0_19] : memref<96x1xf32, #tpu.memory_space<vmem>>, vector<96x1xf32>
      %30 = arith.mulf %19, %28 : vector<96x1xf32>
      %31 = arith.subf %29, %30 : vector<96x1xf32>
      %32 = vector.broadcast %28 : vector<96x1xf32> to vector<96x784xf32>
      %33 = arith.mulf %12, %32 : vector<96x784xf32>
      %34 = vector.broadcast %31 : vector<96x1xf32> to vector<96x784xf32>
      %35 = arith.addf %33, %34 : vector<96x784xf32>
      %c0_20 = arith.constant 0 : index
      %c0_21 = arith.constant 0 : index
      %36 = vector.load %arg5[%c0_20, %c0_21] : memref<96x784xf32, #tpu.memory_space<vmem>>, vector<96x784xf32>
      tpu.vector_store %arg5[%c0_20, %c0_21], %35 {strides = array<i32>} : memref<96x784xf32, #tpu.memory_space<vmem>>, vector<96x784xf32>,
    } else {
    }
    return
  }
  func.func @transform_0(%arg0: i32) -> (i32, i32) {
    %c0_i32 = arith.constant 0 : i32
    %c0_i32_0 = arith.constant 0 : i32
    return %arg0, %c0_i32 : i32, i32
  }
  func.func @transform_1(%arg0: i32) -> (i32, i32) {
    %c0_i32 = arith.constant 0 : i32
    %c0_i32_0 = arith.constant 0 : i32
    return %c0_i32, %arg0 : i32, i32
  }
  func.func @transform_2(%arg0: i32) -> (i32, i32) {
    %c0_i32 = arith.constant 0 : i32
    %c0_i32_0 = arith.constant 0 : i32
    %c0_i32_1 = arith.constant 0 : i32
    return %c0_i32, %c0_i32_0 : i32, i32
  }
  func.func @transform_3(%arg0: i32) -> (i32, i32) {
    %c0_i32 = arith.constant 0 : i32
    %c0_i32_0 = arith.constant 0 : i32
    %c0_i32_1 = arith.constant 0 : i32
    return %c0_i32, %c0_i32_0 : i32, i32
  }
  func.func @transform_4(%arg0: i32) -> (i32, i32) {
    %c0_i32 = arith.constant 0 : i32
    %c0_i32_0 = arith.constant 0 : i32
    %c0_i32_1 = arith.constant 0 : i32
    return %c0_i32, %c0_i32_0 : i32, i32
  }
}

</mosaic_0001>

<llo_original>
// kernel: tpu_custom_call.1
$region0: #{tpu_custom_call.1}
  #allocation0 [shape = 'u32[]', space=smem, size = 0x4, offset = 0x4, fixed_abs, tag = 'smem constant byte address 0x4 - core index']
  #allocation1 [shape = 'u32[144,128]{1,0:T(1,128)}', space=vmem, size = 0x12000, scoped, tag = 'internal scratch']
  %s0 = inlined_call_operand.vmem [shape: f32[384,784], index: 0, kind: input, shape index: {}]
  %s1 = inlined_call_operand.vmem [shape: f32[96,384], index: 1, kind: input, shape index: {}]
  %s2 = inlined_call_operand.vmem [shape: f32[96,1], index: 2, kind: input, shape index: {}]
  %s3 = inlined_call_operand.vmem [shape: f32[96,1], index: 3, kind: input, shape index: {}]
  %s4 = inlined_call_operand.hbm [shape: f32[96,784], index: 4, kind: output, shape index: {}]
  %s5 = sld [smem:[#allocation0]]
  $region95: #{tpu_custom_call.1} parent=0
    _
  %s7 = ssub.s32 1, %s5
  %s8 = scalar_select 0, %s7, %s5
  $region1: #{tpu_custom_call.1} parent=0
    #allocation2 [shape = 'u8[98304]{0}', space=vmem, size = 0x18000, scoped, tag = 'input window, operand 1']
    #allocation3 [shape = 'u8[344064]{0}', space=vmem, size = 0x54000, scoped, tag = 'output window, operand 0, single buffered']
    #allocation4 [shape = 's32[2]{0}', space=sflag, size = 0x8, scoped, tag = 'scoped memory for tpu_custom_call.1']
    %9 = vsyncpa [#allocation4], 0
    loop: start=0, step=1, limit=5
    $region2: #{tpu_custom_call.1} parent=1 // loop_pre_header
      _
    $region3: #{tpu_custom_call.1} parent=1 // loop_header
      %s11 = sphi 0, %s15
      %p12 = scmp.ge.s32.totalorder %s11, 5
      %s21 = sphi 0, %s23
      %s24 = sphi 0, %s21
      %s25 = sphi 0, %s24
      %s41 = sphi 0, %s25
      %s47 = sphi 0, %s49
      %s50 = sphi 0, %s47
      %s51 = sphi 0, %s50
      %s67 = sphi 0, %s51
      %s71 = sphi 0, %s71
      %s73 = sphi 0, %s71
      %s74 = sphi 0, %s73
      %s88 = sphi 0, %s74
      %s92 = sphi 0, %s92
      %s94 = sphi 0, %s92
      %s95 = sphi 0, %s94
      %s109 = sphi 0, %s95
      %s113 = sphi 0, %s113
      %s115 = sphi 0, %s113
      %s116 = sphi 0, %s115
      %s130 = sphi 0, %s116
    $region4: #{tpu_custom_call.1} parent=1 // loop_header_branch
      %14 = sbr.rel (%p12) target = $region8
    $region5: #{tpu_custom_call.1} parent=1 // loop_body
      %s16 = ssub.s32 %s11, 1
      %s17 = ssub.s32 %s11, 2
      %s18 = sadd.s32 %s11, 1
      %s19 = ssub.s32 %s11, %s18
      %p20 = scmp.eq.s32.totalorder %s19, 0
      %s22 = sadd.s32 %s21, 1
      %s23 = scalar_select %p20, %s21, %s22
      %p26 = pneg %p20
      %p27 = scmp.eq.s32.totalorder %s11, 2
      %p28 = por %p26, %p27
      %p29 = scmp.ne.s32.totalorder %s21, %s24
      %p30 = scmp.eq.s32.totalorder %s11, 0
      %p31 = por %p29, %p30
      %p32 = scmp.ne.s32.totalorder %s21, %s24
      %p33 = scmp.eq.s32.totalorder %s16, 2
      %p34 = por %p32, %p33
      %p35 = scmp.ne.s32.totalorder %s24, %s25
      %p36 = scmp.eq.s32.totalorder %s16, 0
      %p37 = por %p35, %p36
      %p38 = scmp.ne.s32.totalorder %s24, %s25
      %p39 = scmp.eq.s32.totalorder %s17, 2
      %p40 = por %p38, %p39
      %p42 = scmp.ne.s32.totalorder %s25, %s41
      %p43 = scmp.eq.s32.totalorder %s17, 0
      %p44 = por %p42, %p43
      %s45 = ssub.s32 %s11, %s18
      %p46 = scmp.eq.s32.totalorder %s45, 0
      %s48 = sadd.s32 %s47, 1
      %s49 = scalar_select %p46, %s47, %s48
      %p52 = pneg %p46
      %p53 = scmp.eq.s32.totalorder %s11, 2
      %p54 = por %p52, %p53
      %p55 = scmp.ne.s32.totalorder %s47, %s50
      %p56 = scmp.eq.s32.totalorder %s11, 0
      %p57 = por %p55, %p56
      %p58 = scmp.ne.s32.totalorder %s47, %s50
      %p59 = scmp.eq.s32.totalorder %s16, 2
      %p60 = por %p58, %p59
      %p61 = scmp.ne.s32.totalorder %s50, %s51
      %p62 = scmp.eq.s32.totalorder %s16, 0
      %p63 = por %p61, %p62
      %p64 = scmp.ne.s32.totalorder %s50, %s51
      %p65 = scmp.eq.s32.totalorder %s17, 2
      %p66 = por %p64, %p65
      %p68 = scmp.ne.s32.totalorder %s51, %s67
      %p69 = scmp.eq.s32.totalorder %s17, 0
      %p70 = por %p68, %p69
      %s72 = sadd.s32 %s71, 1
      %p75 = scmp.eq.s32.totalorder %s11, 2
      %p76 = scmp.ne.s32.totalorder %s71, %s73
      %p77 = scmp.eq.s32.totalorder %s11, 0
      %p78 = por %p76, %p77
      %p79 = scmp.ne.s32.totalorder %s71, %s73
      %p80 = scmp.eq.s32.totalorder %s16, 2
      %p81 = por %p79, %p80
      %p82 = scmp.ne.s32.totalorder %s73, %s74
      %p83 = scmp.eq.s32.totalorder %s16, 0
      %p84 = por %p82, %p83
      %p85 = scmp.ne.s32.totalorder %s73, %s74
      %p86 = scmp.eq.s32.totalorder %s17, 2
      %p87 = por %p85, %p86
      %p89 = scmp.ne.s32.totalorder %s74, %s88
      %p90 = scmp.eq.s32.totalorder %s17, 0
      %p91 = por %p89, %p90
      %s93 = sadd.s32 %s92, 1
      %p96 = scmp.eq.s32.totalorder %s11, 2
      %p97 = scmp.ne.s32.totalorder %s92, %s94
      %p98 = scmp.eq.s32.totalorder %s11, 0
      %p99 = por %p97, %p98
      %p100 = scmp.ne.s32.totalorder %s92, %s94
      %p101 = scmp.eq.s32.totalorder %s16, 2
      %p102 = por %p100, %p101
      %p103 = scmp.ne.s32.totalorder %s94, %s95
      %p104 = scmp.eq.s32.totalorder %s16, 0
      %p105 = por %p103, %p104
      %p106 = scmp.ne.s32.totalorder %s94, %s95
      %p107 = scmp.eq.s32.totalorder %s17, 2
      %p108 = por %p106, %p107
      %p110 = scmp.ne.s32.totalorder %s95, %s109
      %p111 = scmp.eq.s32.totalorder %s17, 0
      %p112 = por %p110, %p111
      %s114 = sadd.s32 %s113, 1
      %p117 = scmp.eq.s32.totalorder %s11, 2
      %p118 = scmp.ne.s32.totalorder %s113, %s115
      %p119 = scmp.eq.s32.totalorder %s11, 0
      %p120 = por %p118, %p119
      %p121 = scmp.ne.s32.totalorder %s113, %s115
      %p122 = scmp.eq.s32.totalorder %s16, 2
      %p123 = por %p121, %p122
      %p124 = scmp.ne.s32.totalorder %s115, %s116
      %p125 = scmp.eq.s32.totalorder %s16, 0
      %p126 = por %p124, %p125
      %p127 = scmp.ne.s32.totalorder %s115, %s116
      %p128 = scmp.eq.s32.totalorder %s17, 2
      %p129 = por %p127, %p128
      %p131 = scmp.ne.s32.totalorder %s116, %s130
      %p132 = scmp.eq.s32.totalorder %s17, 0
      %p133 = por %p131, %p132
      %p134 = scmp.le.s32.totalorder 1, %s11
      %p135 = scmp.lt.s32.totalorder %s11, 4
      %p136 = pnand %p134, %p135
      %p137 = pneg %p136
      // Predicated region
      $region9: #{tpu_custom_call.1} parent=5 // pred_check
        _
      $region10: #{tpu_custom_call.1} parent=5 // pred_check_branch
        %139 = sbr.rel (%p136) target = $region12
      $region11: #{tpu_custom_call.1} parent=5 // pred_region
        %s140 = ssub.s32 %s11, 1
        // Predicated region
        $region13: #{tpu_custom_call.1} parent=11 // pred_check
          %p141 = pneg %p84
        $region14: #{tpu_custom_call.1} parent=11 // pred_check_branch
          %143 = sbr.rel (%p141) target = $region16
        $region15: #{tpu_custom_call.1} parent=11 // pred_region
          _
        $region16: #{tpu_custom_call.1} parent=11 // pred_fallthru
          _
        // Predicated region
        $region17: #{tpu_custom_call.1} parent=11 // pred_check
          %p144 = pneg %p105
        $region18: #{tpu_custom_call.1} parent=11 // pred_check_branch
          %146 = sbr.rel (%p144) target = $region20
        $region19: #{tpu_custom_call.1} parent=11 // pred_region
          _
        $region20: #{tpu_custom_call.1} parent=11 // pred_fallthru
          _
      $region12: #{tpu_custom_call.1} parent=5 // pred_fallthru
        _
      %p147 = scmp.lt.s32.totalorder %s11, 3
      // Predicated region
      $region21: #{tpu_custom_call.1} parent=5 // pred_check
        %p148 = pneg %p147
      $region22: #{tpu_custom_call.1} parent=5 // pred_check_branch
        %150 = sbr.rel (%p148) target = $region24
      $region23: #{tpu_custom_call.1} parent=5 // pred_region
        // Predicated region
        $region25: #{tpu_custom_call.1} parent=23 // pred_check
          %p151 = pneg %p31
        $region26: #{tpu_custom_call.1} parent=23 // pred_check_branch
          %153 = sbr.rel (%p151) target = $region28
        $region27: #{tpu_custom_call.1} parent=23 // pred_region
          %s154 = smul.u32 16, %s11
          %p155 = scmp.lt.s32.totalorder %s154, 47
          %s156 = scalar_select %p155, %s154, 47
          %s157 = smul.addr %s156, 7
          %s158 = smul.addr %s157, 8
          %s159 = scalar_lea.vmem %s0, %s158
          %s160 = smul.u32 16, %s11
        $region28: #{tpu_custom_call.1} parent=23 // pred_fallthru
          _
        // Predicated region
        $region29: #{tpu_custom_call.1} parent=23 // pred_check
          %p161 = pneg %p57
        $region30: #{tpu_custom_call.1} parent=23 // pred_check_branch
          %163 = sbr.rel (%p161) target = $region32
        $region31: #{tpu_custom_call.1} parent=23 // pred_region
          %s164 = sand.u32 %s47, 1
          %s165 = sand.u32 %s47, 1
          %s166 = smul.addr %s165, 96
          %s167 = scalar_lea.vmem [#allocation2], %s166
          %s168 = smul.addr %s11, 8
          %s169 = scalar_lea.vmem %s1, %s168
          // Predicated region
          $region33: #{tpu_custom_call.1} parent=31 // pred_check
            _
          $region34: #{tpu_custom_call.1} parent=31 // pred_check_branch
            %171 = sbr.rel (0) target = $region36
          $region35: #{tpu_custom_call.1} parent=31 // pred_region
            // Predicated region
            $region37: #{tpu_custom_call.1} parent=35 // pred_check
              _
            $region38: #{tpu_custom_call.1} parent=35 // pred_check_branch
              %173 = sbr.rel (0) target = $region40
            $region39: #{tpu_custom_call.1} parent=35 // pred_region
              // Predicated region
              $region52: #{tpu_custom_call.1} parent=39 // pred_check
                _
              $region53: #{tpu_custom_call.1} parent=39 // pred_check_branch
                %211 = sbr.rel (0) target = $region55
              $region54: #{tpu_custom_call.1} parent=39 // pred_region
                loop: start=0, step=1, limit=1
                $region56: #{tpu_custom_call.1} parent=54 // loop_pre_header
                  _
                $region57: #{tpu_custom_call.1} parent=54 // loop_header
                  %s213 = sphi 0, %s217
                  %p214 = scmp.ge.s32.totalorder %s213, 1
                  %s218 = sphi %s169, %s169
                  %s219 = sphi %s167, %s167
                $region58: #{tpu_custom_call.1} parent=54 // loop_header_branch
                  %216 = sbr.rel (%p214) target = $region62
                $region59: #{tpu_custom_call.1} parent=54 // loop_body
                  %v220 = vld [vmem:[%s218] sm:$0xff]
                  %221 = vst [vmem:[%s219] sm:$0xff] %v220
                  %v222 = vld [vmem:[%s218 + $0x18] sm:$0xff]
                  %223 = vst [vmem:[%s219 + $0x8] sm:$0xff] %v222
                  %v224 = vld [vmem:[%s218 + $0x30] sm:$0xff]
                  %225 = vst [vmem:[%s219 + $0x10] sm:$0xff] %v224
                  %v226 = vld [vmem:[%s218 + $0x48] sm:$0xff]
                  %227 = vst [vmem:[%s219 + $0x18] sm:$0xff] %v226
                  %v228 = vld [vmem:[%s218 + $0x60] sm:$0xff]
                  %229 = vst [vmem:[%s219 + $0x20] sm:$0xff] %v228
                  %v230 = vld [vmem:[%s218 + $0x78] sm:$0xff]
                  %231 = vst [vmem:[%s219 + $0x28] sm:$0xff] %v230
                  %v232 = vld [vmem:[%s218 + $0x90] sm:$0xff]
                  %233 = vst [vmem:[%s219 + $0x30] sm:$0xff] %v232
                  %v234 = vld [vmem:[%s218 + $0xa8] sm:$0xff]
                  %235 = vst [vmem:[%s219 + $0x38] sm:$0xff] %v234
                  %v236 = vld [vmem:[%s218 + $0xc0] sm:$0xff]
                  %237 = vst [vmem:[%s219 + $0x40] sm:$0xff] %v236
                  %v238 = vld [vmem:[%s218 + $0xd8] sm:$0xff]
                  %239 = vst [vmem:[%s219 + $0x48] sm:$0xff] %v238
                  %v240 = vld [vmem:[%s218 + $0xf0] sm:$0xff]
                  %241 = vst [vmem:[%s219 + $0x50] sm:$0xff] %v240
                  %v242 = vld [vmem:[%s218 + $0x108] sm:$0xff]
                  %243 = vst [vmem:[%s219 + $0x58] sm:$0xff] %v242
                $region60: #{tpu_custom_call.1} parent=54 // loop_footer
                  %s217 = sadd.s32 1, %s213
                $region61: #{tpu_custom_call.1} parent=54 // loop_footer_branch
                  %212 = sbr.rel target = $region57
                $region62: #{tpu_custom_call.1} parent=54 // loop_exit
                  _
              $region55: #{tpu_custom_call.1} parent=39 // pred_fallthru
                _
              // Predicated region
              $region63: #{tpu_custom_call.1} parent=39 // pred_check
                _
              $region64: #{tpu_custom_call.1} parent=39 // pred_check_branch
                %245 = sbr.rel target = $region66
              $region65: #{tpu_custom_call.1} parent=39 // pred_region
                _
              $region66: #{tpu_custom_call.1} parent=39 // pred_fallthru
                _
            $region40: #{tpu_custom_call.1} parent=35 // pred_fallthru
              _
            // Predicated region
            $region41: #{tpu_custom_call.1} parent=35 // pred_check
              _
            $region42: #{tpu_custom_call.1} parent=35 // pred_check_branch
              %175 = sbr.rel target = $region44
            $region43: #{tpu_custom_call.1} parent=35 // pred_region
              %s177 = ssub.s32 256, 1
              loop: start=0, step=1, limit=1
              $region45: #{tpu_custom_call.1} parent=43 // loop_pre_header
                _
              $region46: #{tpu_custom_call.1} parent=43 // loop_header
                %s179 = sphi 0, %s183
                %p180 = scmp.ge.s32.totalorder %s179, 1
                %s184 = sphi %s169, %s169
                %s185 = sphi %s167, %s167
              $region47: #{tpu_custom_call.1} parent=43 // loop_header_branch
                %182 = sbr.rel (%p180) target = $region51
              $region48: #{tpu_custom_call.1} parent=43 // loop_body
                %v186 = vld [vmem:[%s184] sm:%s177]
                %187 = vst [vmem:[%s185] sm:%s177] %v186
                %v188 = vld [vmem:[%s184 + $0x18] sm:%s177]
                %189 = vst [vmem:[%s185 + $0x8] sm:%s177] %v188
                %v190 = vld [vmem:[%s184 + $0x30] sm:%s177]
                %191 = vst [vmem:[%s185 + $0x10] sm:%s177] %v190
                %v192 = vld [vmem:[%s184 + $0x48] sm:%s177]
                %193 = vst [vmem:[%s185 + $0x18] sm:%s177] %v192
                %v194 = vld [vmem:[%s184 + $0x60] sm:%s177]
                %195 = vst [vmem:[%s185 + $0x20] sm:%s177] %v194
                %v196 = vld [vmem:[%s184 + $0x78] sm:%s177]
                %197 = vst [vmem:[%s185 + $0x28] sm:%s177] %v196
                %v198 = vld [vmem:[%s184 + $0x90] sm:%s177]
                %199 = vst [vmem:[%s185 + $0x30] sm:%s177] %v198
                %v200 = vld [vmem:[%s184 + $0xa8] sm:%s177]
                %201 = vst [vmem:[%s185 + $0x38] sm:%s177] %v200
                %v202 = vld [vmem:[%s184 + $0xc0] sm:%s177]
                %203 = vst [vmem:[%s185 + $0x40] sm:%s177] %v202
                %v204 = vld [vmem:[%s184 + $0xd8] sm:%s177]
                %205 = vst [vmem:[%s185 + $0x48] sm:%s177] %v204
                %v206 = vld [vmem:[%s184 + $0xf0] sm:%s177]
                %207 = vst [vmem:[%s185 + $0x50] sm:%s177] %v206
                %v208 = vld [vmem:[%s184 + $0x108] sm:%s177]
                %209 = vst [vmem:[%s185 + $0x58] sm:%s177] %v208
              $region49: #{tpu_custom_call.1} parent=43 // loop_footer
                %s183 = sadd.s32 1, %s179
              $region50: #{tpu_custom_call.1} parent=43 // loop_footer_branch
                %178 = sbr.rel target = $region46
              $region51: #{tpu_custom_call.1} parent=43 // loop_exit
                _
            $region44: #{tpu_custom_call.1} parent=35 // pred_fallthru
              _
          $region36: #{tpu_custom_call.1} parent=31 // pred_fallthru
            _
          %246 = vnop
        $region32: #{tpu_custom_call.1} parent=23 // pred_fallthru
          _
      $region24: #{tpu_custom_call.1} parent=5 // pred_fallthru
        _
      %p247 = scmp.le.s32.totalorder 1, %s11
      %p248 = scmp.lt.s32.totalorder %s11, 4
      %p249 = pnand %p247, %p248
      %p250 = pneg %p249
      // Predicated region
      $region67: #{tpu_custom_call.1} parent=5 // pred_check
        _
      $region68: #{tpu_custom_call.1} parent=5 // pred_check_branch
        %252 = sbr.rel (%p249) target = $region70
      $region69: #{tpu_custom_call.1} parent=5 // pred_region
        %s253 = ssub.s32 %s11, 1
        %s254 = sand.u32 %s50, 1
        %s255 = sand.u32 %s50, 1
        %s256 = smul.addr %s255, 96
        %s257 = scalar_lea.vmem [#allocation2], %s256
        // Predicated region
        $region71: #{tpu_custom_call.1} parent=69 // pred_check
          %p258 = pneg %p63
        $region72: #{tpu_custom_call.1} parent=69 // pred_check_branch
          %260 = sbr.rel (%p258) target = $region74
        $region73: #{tpu_custom_call.1} parent=69 // pred_region
          _
        $region74: #{tpu_custom_call.1} parent=69 // pred_fallthru
          _
        %s261 = smul.u32 16, %s16
        %p262 = scmp.lt.s32.totalorder %s261, 47
        %s263 = scalar_select %p262, %s261, 47
        %s264 = smul.addr %s263, 7
        %s265 = smul.addr %s264, 8
        %s266 = scalar_lea.vmem %s0, %s265
        %p267 = pneg %p37
        %p268 = pneg %p34
        %s269 = sand.u32 %s50, 1
        %s270 = sand.u32 %s50, 1
        %s271 = smul.addr %s270, 96
        %s272 = scalar_lea.vmem [#allocation2], %s271
        %p273 = pneg %p63
        %p274 = pneg %p60
        %p275 = pneg %p84
        %p276 = pneg %p81
        %p277 = pneg %p105
        %p278 = pneg %p102
        %p279 = pneg %p126
        %p280 = pneg %p123
        %s281 = smul.u32 16, %s16
        %p282 = scmp.lt.s32.totalorder %s281, 47
        %s283 = scalar_select %p282, %s281, 47
        %s284 = smul.addr %s283, 7
        %s285 = smul.addr %s284, 8
        %s286 = scalar_lea.vmem %s0, %s285
        %s287 = smul.u32 16, %s16
        %p288 = scmp.eq.s32.totalorder %s16, 0
        // Predicated region
        $region75: #{tpu_custom_call.1} parent=69 // pred_check
          %p289 = pneg %p288
        $region76: #{tpu_custom_call.1} parent=69 // pred_check_branch
          %291 = sbr.rel (%p289) target = $region78
        $region77: #{tpu_custom_call.1} parent=69 // pred_region
          %292 = vst [vmem:[#allocation3] sm:$0xff] 0.0
          %293 = vst [vmem:[#allocation3 + $0x8] sm:$0xff] 0.0
          %294 = vst [vmem:[#allocation3 + $0x10] sm:$0xff] 0.0
          %295 = vst [vmem:[#allocation3 + $0x18] sm:$0xff] 0.0
          %296 = vst [vmem:[#allocation3 + $0x20] sm:$0xff] 0.0
          %297 = vst [vmem:[#allocation3 + $0x28] sm:$0xff] 0.0
          %vm298 = vcmask 130048
          %299 = vst.msk [vmem:[#allocation3 + $0x30] sm:$0xff] %vm298, 0.0
          %300 = vst [vmem:[#allocation3 + $0x38] sm:$0xff] 0.0
          %301 = vst [vmem:[#allocation3 + $0x40] sm:$0xff] 0.0
          %302 = vst [vmem:[#allocation3 + $0x48] sm:$0xff] 0.0
          %303 = vst [vmem:[#allocation3 + $0x50] sm:$0xff] 0.0
          %304 = vst [vmem:[#allocation3 + $0x58] sm:$0xff] 0.0
          %305 = vst [vmem:[#allocation3 + $0x60] sm:$0xff] 0.0
          %306 = vst.msk [vmem:[#allocation3 + $0x68] sm:$0xff] %vm298, 0.0
          %307 = vst [vmem:[#allocation3 + $0x70] sm:$0xff] 0.0
          %308 = vst [vmem:[#allocation3 + $0x78] sm:$0xff] 0.0
          %309 = vst [vmem:[#allocation3 + $0x80] sm:$0xff] 0.0
          %310 = vst [vmem:[#allocation3 + $0x88] sm:$0xff] 0.0
          %311 = vst [vmem:[#allocation3 + $0x90] sm:$0xff] 0.0
          %312 = vst [vmem:[#allocation3 + $0x98] sm:$0xff] 0.0
          %313 = vst.msk [vmem:[#allocation3 + $0xa0] sm:$0xff] %vm298, 0.0
          %314 = vst [vmem:[#allocation3 + $0xa8] sm:$0xff] 0.0
          %315 = vst [vmem:[#allocation3 + $0xb0] sm:$0xff] 0.0
          %316 = vst [vmem:[#allocation3 + $0xb8] sm:$0xff] 0.0
          %317 = vst [vmem:[#allocation3 + $0xc0] sm:$0xff] 0.0
          %318 = vst [vmem:[#allocation3 + $0xc8] sm:$0xff] 0.0
          %319 = vst [vmem:[#allocation3 + $0xd0] sm:$0xff] 0.0
          %320 = vst.msk [vmem:[#allocation3 + $0xd8] sm:$0xff] %vm298, 0.0
          %321 = vst [vmem:[#allocation3 + $0xe0] sm:$0xff] 0.0
          %322 = vst [vmem:[#allocation3 + $0xe8] sm:$0xff] 0.0
          %323 = vst [vmem:[#allocation3 + $0xf0] sm:$0xff] 0.0
          %324 = vst [vmem:[#allocation3 + $0xf8] sm:$0xff] 0.0
          %325 = vst [vmem:[#allocation3 + $0x100] sm:$0xff] 0.0
          %326 = vst [vmem:[#allocation3 + $0x108] sm:$0xff] 0.0
          %327 = vst.msk [vmem:[#allocation3 + $0x110] sm:$0xff] %vm298, 0.0
          %328 = vst [vmem:[#allocation3 + $0x118] sm:$0xff] 0.0
          %329 = vst [vmem:[#allocation3 + $0x120] sm:$0xff] 0.0
          %330 = vst [vmem:[#allocation3 + $0x128] sm:$0xff] 0.0
          %331 = vst [vmem:[#allocation3 + $0x130] sm:$0xff] 0.0
          %332 = vst [vmem:[#allocation3 + $0x138] sm:$0xff] 0.0
          %333 = vst [vmem:[#allocation3 + $0x140] sm:$0xff] 0.0
          %334 = vst.msk [vmem:[#allocation3 + $0x148] sm:$0xff] %vm298, 0.0
          %335 = vst [vmem:[#allocation3 + $0x150] sm:$0xff] 0.0
          %336 = vst [vmem:[#allocation3 + $0x158] sm:$0xff] 0.0
          %337 = vst [vmem:[#allocation3 + $0x160] sm:$0xff] 0.0
          %338 = vst [vmem:[#allocation3 + $0x168] sm:$0xff] 0.0
          %339 = vst [vmem:[#allocation3 + $0x170] sm:$0xff] 0.0
          %340 = vst [vmem:[#allocation3 + $0x178] sm:$0xff] 0.0
          %341 = vst.msk [vmem:[#allocation3 + $0x180] sm:$0xff] %vm298, 0.0
          %342 = vst [vmem:[#allocation3 + $0x188] sm:$0xff] 0.0
          %343 = vst [vmem:[#allocation3 + $0x190] sm:$0xff] 0.0
          %344 = vst [vmem:[#allocation3 + $0x198] sm:$0xff] 0.0
          %345 = vst [vmem:[#allocation3 + $0x1a0] sm:$0xff] 0.0
          %346 = vst [vmem:[#allocation3 + $0x1a8] sm:$0xff] 0.0
          %347 = vst [vmem:[#allocation3 + $0x1b0] sm:$0xff] 0.0
          %348 = vst.msk [vmem:[#allocation3 + $0x1b8] sm:$0xff] %vm298, 0.0
          %349 = vst [vmem:[#allocation3 + $0x1c0] sm:$0xff] 0.0
          %350 = vst [vmem:[#allocation3 + $0x1c8] sm:$0xff] 0.0
          %351 = vst [vmem:[#allocation3 + $0x1d0] sm:$0xff] 0.0
          %352 = vst [vmem:[#allocation3 + $0x1d8] sm:$0xff] 0.0
          %353 = vst [vmem:[#allocation3 + $0x1e0] sm:$0xff] 0.0
          %354 = vst [vmem:[#allocation3 + $0x1e8] sm:$0xff] 0.0
          %355 = vst.msk [vmem:[#allocation3 + $0x1f0] sm:$0xff] %vm298, 0.0
          %356 = vst [vmem:[#allocation3 + $0x1f8] sm:$0xff] 0.0
          %357 = vst [vmem:[#allocation3 + $0x200] sm:$0xff] 0.0
          %358 = vst [vmem:[#allocation3 + $0x208] sm:$0xff] 0.0
          %359 = vst [vmem:[#allocation3 + $0x210] sm:$0xff] 0.0
          %360 = vst [vmem:[#allocation3 + $0x218] sm:$0xff] 0.0
          %361 = vst [vmem:[#allocation3 + $0x220] sm:$0xff] 0.0
          %362 = vst.msk [vmem:[#allocation3 + $0x228] sm:$0xff] %vm298, 0.0
          %363 = vst [vmem:[#allocation3 + $0x230] sm:$0xff] 0.0
          %364 = vst [vmem:[#allocation3 + $0x238] sm:$0xff] 0.0
          %365 = vst [vmem:[#allocation3 + $0x240] sm:$0xff] 0.0
          %366 = vst [vmem:[#allocation3 + $0x248] sm:$0xff] 0.0
          %367 = vst [vmem:[#allocation3 + $0x250] sm:$0xff] 0.0
          %368 = vst [vmem:[#allocation3 + $0x258] sm:$0xff] 0.0
          %369 = vst.msk [vmem:[#allocation3 + $0x260] sm:$0xff] %vm298, 0.0
          %370 = vst [vmem:[#allocation3 + $0x268] sm:$0xff] 0.0
          %371 = vst [vmem:[#allocation3 + $0x270] sm:$0xff] 0.0
          %372 = vst [vmem:[#allocation3 + $0x278] sm:$0xff] 0.0
          %373 = vst [vmem:[#allocation3 + $0x280] sm:$0xff] 0.0
          %374 = vst [vmem:[#allocation3 + $0x288] sm:$0xff] 0.0
          %375 = vst [vmem:[#allocation3 + $0x290] sm:$0xff] 0.0
          %376 = vst.msk [vmem:[#allocation3 + $0x298] sm:$0xff] %vm298, 0.0
        $region78: #{tpu_custom_call.1} parent=69 // pred_fallthru
          _
        %v377 = vld [vmem:[#allocation3] sm:$0xff]
        %v378 = vld [vmem:[#allocation3 + $0x8] sm:$0xff]
        %v379 = vld [vmem:[#allocation3 + $0x10] sm:$0xff]
        %v380 = vld [vmem:[#allocation3 + $0x18] sm:$0xff]
        %v381 = vld [vmem:[#allocation3 + $0x20] sm:$0xff]
        %v382 = vld [vmem:[#allocation3 + $0x28] sm:$0xff]
        %v383 = vld [vmem:[#allocation3 + $0x30] sm:$0xff]
        %v384 = vld [vmem:[#allocation3 + $0x38] sm:$0xff]
        %v385 = vld [vmem:[#allocation3 + $0x40] sm:$0xff]
        %v386 = vld [vmem:[#allocation3 + $0x48] sm:$0xff]
        %v387 = vld [vmem:[#allocation3 + $0x50] sm:$0xff]
        %v388 = vld [vmem:[#allocation3 + $0x58] sm:$0xff]
        %v389 = vld [vmem:[#allocation3 + $0x60] sm:$0xff]
        %v390 = vld [vmem:[#allocation3 + $0x68] sm:$0xff]
        %v391 = vld [vmem:[#allocation3 + $0x70] sm:$0xff]
        %v392 = vld [vmem:[#allocation3 + $0x78] sm:$0xff]
        %v393 = vld [vmem:[#allocation3 + $0x80] sm:$0xff]
        %v394 = vld [vmem:[#allocation3 + $0x88] sm:$0xff]
        %v395 = vld [vmem:[#allocation3 + $0x90] sm:$0xff]
        %v396 = vld [vmem:[#allocation3 + $0x98] sm:$0xff]
        %v397 = vld [vmem:[#allocation3 + $0xa0] sm:$0xff]
        %v398 = vld [vmem:[#allocation3 + $0xa8] sm:$0xff]
        %v399 = vld [vmem:[#allocation3 + $0xb0] sm:$0xff]
        %v400 = vld [vmem:[#allocation3 + $0xb8] sm:$0xff]
        %v401 = vld [vmem:[#allocation3 + $0xc0] sm:$0xff]
        %v402 = vld [vmem:[#allocation3 + $0xc8] sm:$0xff]
        %v403 = vld [vmem:[#allocation3 + $0xd0] sm:$0xff]
        %v404 = vld [vmem:[#allocation3 + $0xd8] sm:$0xff]
        %v405 = vld [vmem:[#allocation3 + $0xe0] sm:$0xff]
        %v406 = vld [vmem:[#allocation3 + $0xe8] sm:$0xff]
        %v407 = vld [vmem:[#allocation3 + $0xf0] sm:$0xff]
        %v408 = vld [vmem:[#allocation3 + $0xf8] sm:$0xff]
        %v409 = vld [vmem:[#allocation3 + $0x100] sm:$0xff]
        %v410 = vld [vmem:[#allocation3 + $0x108] sm:$0xff]
        %v411 = vld [vmem:[#allocation3 + $0x110] sm:$0xff]
        %v412 = vld [vmem:[#allocation3 + $0x118] sm:$0xff]
        %v413 = vld [vmem:[#allocation3 + $0x120] sm:$0xff]
        %v414 = vld [vmem:[#allocation3 + $0x128] sm:$0xff]
        %v415 = vld [vmem:[#allocation3 + $0x130] sm:$0xff]
        %v416 = vld [vmem:[#allocation3 + $0x138] sm:$0xff]
        %v417 = vld [vmem:[#allocation3 + $0x140] sm:$0xff]
        %v418 = vld [vmem:[#allocation3 + $0x148] sm:$0xff]
        %v419 = vld [vmem:[#allocation3 + $0x150] sm:$0xff]
        %v420 = vld [vmem:[#allocation3 + $0x158] sm:$0xff]
        %v421 = vld [vmem:[#allocation3 + $0x160] sm:$0xff]
        %v422 = vld [vmem:[#allocation3 + $0x168] sm:$0xff]
        %v423 = vld [vmem:[#allocation3 + $0x170] sm:$0xff]
        %v424 = vld [vmem:[#allocation3 + $0x178] sm:$0xff]
        %v425 = vld [vmem:[#allocation3 + $0x180] sm:$0xff]
        %v426 = vld [vmem:[#allocation3 + $0x188] sm:$0xff]
        %v427 = vld [vmem:[#allocation3 + $0x190] sm:$0xff]
        %v428 = vld [vmem:[#allocation3 + $0x198] sm:$0xff]
        %v429 = vld [vmem:[#allocation3 + $0x1a0] sm:$0xff]
        %v430 = vld [vmem:[#allocation3 + $0x1a8] sm:$0xff]
        %v431 = vld [vmem:[#allocation3 + $0x1b0] sm:$0xff]
        %v432 = vld [vmem:[#allocation3 + $0x1b8] sm:$0xff]
        %v433 = vld [vmem:[#allocation3 + $0x1c0] sm:$0xff]
        %v434 = vld [vmem:[#allocation3 + $0x1c8] sm:$0xff]
        %v435 = vld [vmem:[#allocation3 + $0x1d0] sm:$0xff]
        %v436 = vld [vmem:[#allocation3 + $0x1d8] sm:$0xff]
        %v437 = vld [vmem:[#allocation3 + $0x1e0] sm:$0xff]
        %v438 = vld [vmem:[#allocation3 + $0x1e8] sm:$0xff]
        %v439 = vld [vmem:[#allocation3 + $0x1f0] sm:$0xff]
        %v440 = vld [vmem:[#allocation3 + $0x1f8] sm:$0xff]
        %v441 = vld [vmem:[#allocation3 + $0x200] sm:$0xff]
        %v442 = vld [vmem:[#allocation3 + $0x208] sm:$0xff]
        %v443 = vld [vmem:[#allocation3 + $0x210] sm:$0xff]
        %v444 = vld [vmem:[#allocation3 + $0x218] sm:$0xff]
        %v445 = vld [vmem:[#allocation3 + $0x220] sm:$0xff]
        %v446 = vld [vmem:[#allocation3 + $0x228] sm:$0xff]
        %v447 = vld [vmem:[#allocation3 + $0x230] sm:$0xff]
        %v448 = vld [vmem:[#allocation3 + $0x238] sm:$0xff]
        %v449 = vld [vmem:[#allocation3 + $0x240] sm:$0xff]
        %v450 = vld [vmem:[#allocation3 + $0x248] sm:$0xff]
        %v451 = vld [vmem:[#allocation3 + $0x250] sm:$0xff]
        %v452 = vld [vmem:[#allocation3 + $0x258] sm:$0xff]
        %v453 = vld [vmem:[#allocation3 + $0x260] sm:$0xff]
        %v454 = vld [vmem:[#allocation3 + $0x268] sm:$0xff]
        %v455 = vld [vmem:[#allocation3 + $0x270] sm:$0xff]
        %v456 = vld [vmem:[#allocation3 + $0x278] sm:$0xff]
        %v457 = vld [vmem:[#allocation3 + $0x280] sm:$0xff]
        %v458 = vld [vmem:[#allocation3 + $0x288] sm:$0xff]
        %v459 = vld [vmem:[#allocation3 + $0x290] sm:$0xff]
        %v460 = vld [vmem:[#allocation3 + $0x298] sm:$0xff]
        %v461 = vld [vmem:[%s257] sm:$0xff]
        %v462 = vld [vmem:[%s257 + $0x8] sm:$0xff]
        %v463 = vld [vmem:[%s257 + $0x10] sm:$0xff]
        %v464 = vld [vmem:[%s257 + $0x18] sm:$0xff]
        %v465 = vld [vmem:[%s257 + $0x20] sm:$0xff]
        %v466 = vld [vmem:[%s257 + $0x28] sm:$0xff]
        %v467 = vld [vmem:[%s257 + $0x30] sm:$0xff]
        %v468 = vld [vmem:[%s257 + $0x38] sm:$0xff]
        %v469 = vld [vmem:[%s257 + $0x40] sm:$0xff]
        %v470 = vld [vmem:[%s257 + $0x48] sm:$0xff]
        %v471 = vld [vmem:[%s257 + $0x50] sm:$0xff]
        %v472 = vld [vmem:[%s257 + $0x58] sm:$0xff]
        %v473 = vld [vmem:[%s286] sm:$0xff]
        %v474 = vld [vmem:[%s286 + $0x8] sm:$0xff]
        %v475 = vld [vmem:[%s286 + $0x10] sm:$0xff]
        %v476 = vld [vmem:[%s286 + $0x18] sm:$0xff]
        %v477 = vld [vmem:[%s286 + $0x20] sm:$0xff]
        %v478 = vld [vmem:[%s286 + $0x28] sm:$0xff]
        %v479 = vld [vmem:[%s286 + $0x30] sm:$0xff]
        %v480 = vld [vmem:[%s286 + $0x38] sm:$0xff]
        %v481 = vld [vmem:[%s286 + $0x40] sm:$0xff]
        %v482 = vld [vmem:[%s286 + $0x48] sm:$0xff]
        %v483 = vld [vmem:[%s286 + $0x50] sm:$0xff]
        %v484 = vld [vmem:[%s286 + $0x58] sm:$0xff]
        %v485 = vld [vmem:[%s286 + $0x60] sm:$0xff]
        %v486 = vld [vmem:[%s286 + $0x68] sm:$0xff]
        %v487 = vld [vmem:[%s286 + $0x70] sm:$0xff]
        %v488 = vld [vmem:[%s286 + $0x78] sm:$0xff]
        %v489 = vld [vmem:[%s286 + $0x80] sm:$0xff]
        %v490 = vld [vmem:[%s286 + $0x88] sm:$0xff]
        %v491 = vld [vmem:[%s286 + $0x90] sm:$0xff]
        %v492 = vld [vmem:[%s286 + $0x98] sm:$0xff]
        %v493 = vld [vmem:[%s286 + $0xa0] sm:$0xff]
        %v494 = vld [vmem:[%s286 + $0xa8] sm:$0xff]
        %v495 = vld [vmem:[%s286 + $0xb0] sm:$0xff]
        %v496 = vld [vmem:[%s286 + $0xb8] sm:$0xff]
        %v497 = vld [vmem:[%s286 + $0xc0] sm:$0xff]
        %v498 = vld [vmem:[%s286 + $0xc8] sm:$0xff]
        %v499 = vld [vmem:[%s286 + $0xd0] sm:$0xff]
        %v500 = vld [vmem:[%s286 + $0xd8] sm:$0xff]
        %v501 = vld [vmem:[%s286 + $0xe0] sm:$0xff]
        %v502 = vld [vmem:[%s286 + $0xe8] sm:$0xff]
        %v503 = vld [vmem:[%s286 + $0xf0] sm:$0xff]
        %v504 = vld [vmem:[%s286 + $0xf8] sm:$0xff]
        %v505 = vld [vmem:[%s286 + $0x100] sm:$0xff]
        %v506 = vld [vmem:[%s286 + $0x108] sm:$0xff]
        %v507 = vld [vmem:[%s286 + $0x110] sm:$0xff]
        %v508 = vld [vmem:[%s286 + $0x118] sm:$0xff]
        %v509 = vld [vmem:[%s286 + $0x120] sm:$0xff]
        %v510 = vld [vmem:[%s286 + $0x128] sm:$0xff]
        %v511 = vld [vmem:[%s286 + $0x130] sm:$0xff]
        %v512 = vld [vmem:[%s286 + $0x138] sm:$0xff]
        %v513 = vld [vmem:[%s286 + $0x140] sm:$0xff]
        %v514 = vld [vmem:[%s286 + $0x148] sm:$0xff]
        %v515 = vld [vmem:[%s286 + $0x150] sm:$0xff]
        %v516 = vld [vmem:[%s286 + $0x158] sm:$0xff]
        %v517 = vld [vmem:[%s286 + $0x160] sm:$0xff]
        %v518 = vld [vmem:[%s286 + $0x168] sm:$0xff]
        %v519 = vld [vmem:[%s286 + $0x170] sm:$0xff]
        %v520 = vld [vmem:[%s286 + $0x178] sm:$0xff]
        %v521 = vld [vmem:[%s286 + $0x180] sm:$0xff]
        %v522 = vld [vmem:[%s286 + $0x188] sm:$0xff]
        %v523 = vld [vmem:[%s286 + $0x190] sm:$0xff]
        %v524 = vld [vmem:[%s286 + $0x198] sm:$0xff]
        %v525 = vld [vmem:[%s286 + $0x1a0] sm:$0xff]
        %v526 = vld [vmem:[%s286 + $0x1a8] sm:$0xff]
        %v527 = vld [vmem:[%s286 + $0x1b0] sm:$0xff]
        %v528 = vld [vmem:[%s286 + $0x1b8] sm:$0xff]
        %v529 = vld [vmem:[%s286 + $0x1c0] sm:$0xff]
        %v530 = vld [vmem:[%s286 + $0x1c8] sm:$0xff]
        %v531 = vld [vmem:[%s286 + $0x1d0] sm:$0xff]
        %v532 = vld [vmem:[%s286 + $0x1d8] sm:$0xff]
        %v533 = vld [vmem:[%s286 + $0x1e0] sm:$0xff]
        %v534 = vld [vmem:[%s286 + $0x1e8] sm:$0xff]
        %v535 = vld [vmem:[%s286 + $0x1f0] sm:$0xff]
        %v536 = vld [vmem:[%s286 + $0x1f8] sm:$0xff]
        %v537 = vld [vmem:[%s286 + $0x200] sm:$0xff]
        %v538 = vld [vmem:[%s286 + $0x208] sm:$0xff]
        %v539 = vld [vmem:[%s286 + $0x210] sm:$0xff]
        %v540 = vld [vmem:[%s286 + $0x218] sm:$0xff]
        %v541 = vld [vmem:[%s286 + $0x220] sm:$0xff]
        %v542 = vld [vmem:[%s286 + $0x228] sm:$0xff]
        %v543 = vld [vmem:[%s286 + $0x230] sm:$0xff]
        %v544 = vld [vmem:[%s286 + $0x238] sm:$0xff]
        %v545 = vld [vmem:[%s286 + $0x240] sm:$0xff]
        %v546 = vld [vmem:[%s286 + $0x248] sm:$0xff]
        %v547 = vld [vmem:[%s286 + $0x250] sm:$0xff]
        %v548 = vld [vmem:[%s286 + $0x258] sm:$0xff]
        %v549 = vld [vmem:[%s286 + $0x260] sm:$0xff]
        %v550 = vld [vmem:[%s286 + $0x268] sm:$0xff]
        %v551 = vld [vmem:[%s286 + $0x270] sm:$0xff]
        %v552 = vld [vmem:[%s286 + $0x278] sm:$0xff]
        %v553 = vld [vmem:[%s286 + $0x280] sm:$0xff]
        %v554 = vld [vmem:[%s286 + $0x288] sm:$0xff]
        %v555 = vld [vmem:[%s286 + $0x290] sm:$0xff]
        %v556 = vld [vmem:[%s286 + $0x298] sm:$0xff]
        %v557 = vld [vmem:[%s286 + $0x2a0] sm:$0xff]
        %v558 = vld [vmem:[%s286 + $0x2a8] sm:$0xff]
        %v559 = vld [vmem:[%s286 + $0x2b0] sm:$0xff]
        %v560 = vld [vmem:[%s286 + $0x2b8] sm:$0xff]
        %v561 = vld [vmem:[%s286 + $0x2c0] sm:$0xff]
        %v562 = vld [vmem:[%s286 + $0x2c8] sm:$0xff]
        %v563 = vld [vmem:[%s286 + $0x2d0] sm:$0xff]
        %v564 = vld [vmem:[%s286 + $0x2d8] sm:$0xff]
        %v565 = vld [vmem:[%s286 + $0x2e0] sm:$0xff]
        %v566 = vld [vmem:[%s286 + $0x2e8] sm:$0xff]
        %v567 = vld [vmem:[%s286 + $0x2f0] sm:$0xff]
        %v568 = vld [vmem:[%s286 + $0x2f8] sm:$0xff]
        %v569 = vld [vmem:[%s286 + $0x300] sm:$0xff]
        %v570 = vld [vmem:[%s286 + $0x308] sm:$0xff]
        %v571 = vld [vmem:[%s286 + $0x310] sm:$0xff]
        %v572 = vld [vmem:[%s286 + $0x318] sm:$0xff]
        %v573 = vld [vmem:[%s286 + $0x320] sm:$0xff]
        %v574 = vld [vmem:[%s286 + $0x328] sm:$0xff]
        %v575 = vld [vmem:[%s286 + $0x330] sm:$0xff]
        %v576 = vld [vmem:[%s286 + $0x338] sm:$0xff]
        %v577 = vld [vmem:[%s286 + $0x340] sm:$0xff]
        %v578 = vld [vmem:[%s286 + $0x348] sm:$0xff]
        %v579 = vld [vmem:[%s286 + $0x350] sm:$0xff]
        %v580 = vld [vmem:[%s286 + $0x358] sm:$0xff]
        %v581 = vld [vmem:[%s286 + $0x360] sm:$0xff]
        %v582 = vld [vmem:[%s286 + $0x368] sm:$0xff]
        %v583 = vld [vmem:[%s286 + $0x370] sm:$0xff]
        %v584 = vld [vmem:[%s286 + $0x378] sm:$0xff]
        %585 = vmatprep.subr.mxu0 %v579
        %586 = vmatpush1.msra.mxu0 %v578
        %587 = vmatprep.subr.mxu0 %v572
        %588 = vmatpush1.msra.mxu0 %v571
        %589 = vmatprep.subr.mxu0 %v565
        %590 = vmatpush1.msra.mxu0 %v564
        %591 = vmatprep.subr.mxu0 %v558
        %592 = vmatpush1.msra.mxu0 %v557
        %593 = vmatprep.subr.mxu0 %v551
        %594 = vmatpush1.msra.mxu0 %v550
        %595 = vmatprep.subr.mxu0 %v544
        %596 = vmatpush1.msra.mxu0 %v543
        %597 = vmatprep.subr.mxu0 %v537
        %598 = vmatpush1.msra.mxu0 %v536
        %599 = vmatprep.subr.mxu0 %v530
        %600 = vmatpush1.msra.mxu0 %v529
        %601 = vmatprep.subr.mxu0 %v523
        %602 = vmatpush1.msra.mxu0 %v522
        %603 = vmatprep.subr.mxu0 %v516
        %604 = vmatpush1.msra.mxu0 %v515
        %605 = vmatprep.subr.mxu0 %v509
        %606 = vmatpush1.msra.mxu0 %v508
        %607 = vmatprep.subr.mxu0 %v502
        %608 = vmatpush1.msra.mxu0 %v501
        %609 = vmatprep.subr.mxu0 %v495
        %610 = vmatpush1.msra.mxu0 %v494
        %611 = vmatprep.subr.mxu0 %v488
        %612 = vmatpush1.msra.mxu0 %v487
        %613 = vmatprep.subr.mxu0 %v481
        %614 = vmatpush1.msra.mxu0 %v480
        %615 = vmatprep.subr.mxu0 %v474
        %616 = vmatpush1.msra.mxu0 %v473
        %617 = vmatprep.subr.mxu0 0.0
        %618 = vmatpush2.msra.mxu0 0.0
        %619 = vmatprep.subr.mxu0 0.0
        %620 = vmatpush2.msra.mxu0 0.0
        %621 = vmatprep.subr.mxu0 0.0
        %622 = vmatpush2.msra.mxu0 0.0
        %623 = vmatprep.subr.mxu0 0.0
        %624 = vmatpush2.msra.mxu0 0.0
        %625 = vmatprep.subr.mxu0 0.0
        %626 = vmatpush2.msra.mxu0 0.0
        %627 = vmatprep.subr.mxu0 0.0
        %628 = vmatpush2.msra.mxu0 0.0
        %629 = vmatprep.subr.mxu0 0.0
        %630 = vmatpush2.msra.mxu0 0.0
        %631 = vmatprep.subr.mxu0 0.0
        %632 = vmatpush2.msra.mxu0 0.0
        %633 = vmatprep.subr.mxu0 0.0
        %634 = vmatpush2.msra.mxu0 0.0
        %635 = vmatprep.subr.mxu0 0.0
        %636 = vmatpush2.msra.mxu0 0.0
        %637 = vmatprep.subr.mxu0 0.0
        %638 = vmatpush2.msra.mxu0 0.0
        %639 = vmatprep.subr.mxu0 0.0
        %640 = vmatpush2.msra.mxu0 0.0
        %641 = vmatprep.subr.mxu0 0.0
        %642 = vmatpush2.msra.mxu0 0.0
        %643 = vmatprep.subr.mxu0 0.0
        %644 = vmatpush2.msra.mxu0 0.0
        %645 = vmatprep.subr.mxu0 0.0
        %646 = vmatpush2.msra.mxu0 0.0
        %647 = vmatprep.subr.mxu0 0.0
        %648 = vmatpush2.msra.mxu0 0.0
        %649 = vmatprep.mubr.f32.mxu0 0.0
        %650 = vmatmul.mubr.f32.gmra.mxu0 %v461
        %v651 = vpop.f32.mrf.mxu0
        %v652 = vadd.f32 0.0, %v651
        %v653 = vpop.f32.mrf.mxu0
        %v654 = vadd.f32 0.0, %v653
        %655 = vmatprep.mubr.f32.mxu0 0.0
        %656 = vmatmul.mubr.f32.gmra.mxu0 %v462
        %v657 = vpop.f32.mrf.mxu0
        %v658 = vadd.f32 0.0, %v657
        %v659 = vpop.f32.mrf.mxu0
        %v660 = vadd.f32 0.0, %v659
        %661 = vmatprep.mubr.f32.mxu0 0.0
        %662 = vmatmul.mubr.f32.gmra.mxu0 %v463
        %v663 = vpop.f32.mrf.mxu0
        %v664 = vadd.f32 0.0, %v663
        %v665 = vpop.f32.mrf.mxu0
        %v666 = vadd.f32 0.0, %v665
        %667 = vmatprep.mubr.f32.mxu0 0.0
        %668 = vmatmul.mubr.f32.gmra.mxu0 %v464
        %v669 = vpop.f32.mrf.mxu0
        %v670 = vadd.f32 0.0, %v669
        %v671 = vpop.f32.mrf.mxu0
        %v672 = vadd.f32 0.0, %v671
        %673 = vmatprep.mubr.f32.mxu0 0.0
        %674 = vmatmul.mubr.f32.gmra.mxu0 %v465
        %v675 = vpop.f32.mrf.mxu0
        %v676 = vadd.f32 0.0, %v675
        %v677 = vpop.f32.mrf.mxu0
        %v678 = vadd.f32 0.0, %v677
        %679 = vmatprep.mubr.f32.mxu0 0.0
        %680 = vmatmul.mubr.f32.gmra.mxu0 %v466
        %v681 = vpop.f32.mrf.mxu0
        %v682 = vadd.f32 0.0, %v681
        %v683 = vpop.f32.mrf.mxu0
        %v684 = vadd.f32 0.0, %v683
        %685 = vmatprep.mubr.f32.mxu0 0.0
        %686 = vmatmul.mubr.f32.gmra.mxu0 %v467
        %v687 = vpop.f32.mrf.mxu0
        %v688 = vadd.f32 0.0, %v687
        %v689 = vpop.f32.mrf.mxu0
        %v690 = vadd.f32 0.0, %v689
        %691 = vmatprep.mubr.f32.mxu0 0.0
        %692 = vmatmul.mubr.f32.gmra.mxu0 %v468
        %v693 = vpop.f32.mrf.mxu0
        %v694 = vadd.f32 0.0, %v693
        %v695 = vpop.f32.mrf.mxu0
        %v696 = vadd.f32 0.0, %v695
        %697 = vmatprep.mubr.f32.mxu0 0.0
        %698 = vmatmul.mubr.f32.gmra.mxu0 %v469
        %v699 = vpop.f32.mrf.mxu0
        %v700 = vadd.f32 0.0, %v699
        %v701 = vpop.f32.mrf.mxu0
        %v702 = vadd.f32 0.0, %v701
        %703 = vmatprep.mubr.f32.mxu0 0.0
        %704 = vmatmul.mubr.f32.gmra.mxu0 %v470
        %v705 = vpop.f32.mrf.mxu0
        %v706 = vadd.f32 0.0, %v705
        %v707 = vpop.f32.mrf.mxu0
        %v708 = vadd.f32 0.0, %v707
        %709 = vmatprep.mubr.f32.mxu0 0.0
        %710 = vmatmul.mubr.f32.gmra.mxu0 %v471
        %v711 = vpop.f32.mrf.mxu0
        %v712 = vadd.f32 0.0, %v711
        %v713 = vpop.f32.mrf.mxu0
        %v714 = vadd.f32 0.0, %v713
        %715 = vmatprep.mubr.f32.mxu0 0.0
        %716 = vmatmul.mubr.f32.gmra.mxu0 %v472
        %v717 = vpop.f32.mrf.mxu0
        %v718 = vadd.f32 0.0, %v717
        %v719 = vpop.f32.mrf.mxu0
        %v720 = vadd.f32 0.0, %v719
        %721 = vdwg.mxu0
        %722 = vmatprep.subr.mxu0 %v581
        %723 = vmatpush1.msra.mxu0 %v580
        %724 = vmatprep.subr.mxu0 %v574
        %725 = vmatpush1.msra.mxu0 %v573
        %726 = vmatprep.subr.mxu0 %v567
        %727 = vmatpush1.msra.mxu0 %v566
        %728 = vmatprep.subr.mxu0 %v560
        %729 = vmatpush1.msra.mxu0 %v559
        %730 = vmatprep.subr.mxu0 %v553
        %731 = vmatpush1.msra.mxu0 %v552
        %732 = vmatprep.subr.mxu0 %v546
        %733 = vmatpush1.msra.mxu0 %v545
        %734 = vmatprep.subr.mxu0 %v539
        %735 = vmatpush1.msra.mxu0 %v538
        %736 = vmatprep.subr.mxu0 %v532
        %737 = vmatpush1.msra.mxu0 %v531
        %738 = vmatprep.subr.mxu0 %v525
        %739 = vmatpush1.msra.mxu0 %v524
        %740 = vmatprep.subr.mxu0 %v518
        %741 = vmatpush1.msra.mxu0 %v517
        %742 = vmatprep.subr.mxu0 %v511
        %743 = vmatpush1.msra.mxu0 %v510
        %744 = vmatprep.subr.mxu0 %v504
        %745 = vmatpush1.msra.mxu0 %v503
        %746 = vmatprep.subr.mxu0 %v497
        %747 = vmatpush1.msra.mxu0 %v496
        %748 = vmatprep.subr.mxu0 %v490
        %749 = vmatpush1.msra.mxu0 %v489
        %750 = vmatprep.subr.mxu0 %v483
        %751 = vmatpush1.msra.mxu0 %v482
        %752 = vmatprep.subr.mxu0 %v476
        %753 = vmatpush1.msra.mxu0 %v475
        %754 = vmatprep.subr.mxu0 0.0
        %755 = vmatpush2.msra.mxu0 0.0
        %756 = vmatprep.subr.mxu0 0.0
        %757 = vmatpush2.msra.mxu0 0.0
        %758 = vmatprep.subr.mxu0 0.0
        %759 = vmatpush2.msra.mxu0 0.0
        %760 = vmatprep.subr.mxu0 0.0
        %761 = vmatpush2.msra.mxu0 0.0
        %762 = vmatprep.subr.mxu0 0.0
        %763 = vmatpush2.msra.mxu0 0.0
        %764 = vmatprep.subr.mxu0 0.0
        %765 = vmatpush2.msra.mxu0 0.0
        %766 = vmatprep.subr.mxu0 0.0
        %767 = vmatpush2.msra.mxu0 0.0
        %768 = vmatprep.subr.mxu0 0.0
        %769 = vmatpush2.msra.mxu0 0.0
        %770 = vmatprep.subr.mxu0 0.0
        %771 = vmatpush2.msra.mxu0 0.0
        %772 = vmatprep.subr.mxu0 0.0
        %773 = vmatpush2.msra.mxu0 0.0
        %774 = vmatprep.subr.mxu0 0.0
        %775 = vmatpush2.msra.mxu0 0.0
        %776 = vmatprep.subr.mxu0 0.0
        %777 = vmatpush2.msra.mxu0 0.0
        %778 = vmatprep.subr.mxu0 0.0
        %779 = vmatpush2.msra.mxu0 0.0
        %780 = vmatprep.subr.mxu0 0.0
        %781 = vmatpush2.msra.mxu0 0.0
        %782 = vmatprep.subr.mxu0 0.0
        %783 = vmatpush2.msra.mxu0 0.0
        %784 = vmatprep.subr.mxu0 0.0
        %785 = vmatpush2.msra.mxu0 0.0
        %786 = vmatprep.mubr.f32.mxu0 0.0
        %787 = vmatmul.mubr.f32.gmra.mxu0 %v461
        %v788 = vpop.f32.mrf.mxu0
        %v789 = vadd.f32 0.0, %v788
        %v790 = vpop.f32.mrf.mxu0
        %v791 = vadd.f32 0.0, %v790
        %792 = vmatprep.mubr.f32.mxu0 0.0
        %793 = vmatmul.mubr.f32.gmra.mxu0 %v462
        %v794 = vpop.f32.mrf.mxu0
        %v795 = vadd.f32 0.0, %v794
        %v796 = vpop.f32.mrf.mxu0
        %v797 = vadd.f32 0.0, %v796
        %798 = vmatprep.mubr.f32.mxu0 0.0
        %799 = vmatmul.mubr.f32.gmra.mxu0 %v463
        %v800 = vpop.f32.mrf.mxu0
        %v801 = vadd.f32 0.0, %v800
        %v802 = vpop.f32.mrf.mxu0
        %v803 = vadd.f32 0.0, %v802
        %804 = vmatprep.mubr.f32.mxu0 0.0
        %805 = vmatmul.mubr.f32.gmra.mxu0 %v464
        %v806 = vpop.f32.mrf.mxu0
        %v807 = vadd.f32 0.0, %v806
        %v808 = vpop.f32.mrf.mxu0
        %v809 = vadd.f32 0.0, %v808
        %810 = vmatprep.mubr.f32.mxu0 0.0
        %811 = vmatmul.mubr.f32.gmra.mxu0 %v465
        %v812 = vpop.f32.mrf.mxu0
        %v813 = vadd.f32 0.0, %v812
        %v814 = vpop.f32.mrf.mxu0
        %v815 = vadd.f32 0.0, %v814
        %816 = vmatprep.mubr.f32.mxu0 0.0
        %817 = vmatmul.mubr.f32.gmra.mxu0 %v466
        %v818 = vpop.f32.mrf.mxu0
        %v819 = vadd.f32 0.0, %v818
        %v820 = vpop.f32.mrf.mxu0
        %v821 = vadd.f32 0.0, %v820
        %822 = vmatprep.mubr.f32.mxu0 0.0
        %823 = vmatmul.mubr.f32.gmra.mxu0 %v467
        %v824 = vpop.f32.mrf.mxu0
        %v825 = vadd.f32 0.0, %v824
        %v826 = vpop.f32.mrf.mxu0
        %v827 = vadd.f32 0.0, %v826
        %828 = vmatprep.mubr.f32.mxu0 0.0
        %829 = vmatmul.mubr.f32.gmra.mxu0 %v468
        %v830 = vpop.f32.mrf.mxu0
        %v831 = vadd.f32 0.0, %v830
        %v832 = vpop.f32.mrf.mxu0
        %v833 = vadd.f32 0.0, %v832
        %834 = vmatprep.mubr.f32.mxu0 0.0
        %835 = vmatmul.mubr.f32.gmra.mxu0 %v469
        %v836 = vpop.f32.mrf.mxu0
        %v837 = vadd.f32 0.0, %v836
        %v838 = vpop.f32.mrf.mxu0
        %v839 = vadd.f32 0.0, %v838
        %840 = vmatprep.mubr.f32.mxu0 0.0
        %841 = vmatmul.mubr.f32.gmra.mxu0 %v470
        %v842 = vpop.f32.mrf.mxu0
        %v843 = vadd.f32 0.0, %v842
        %v844 = vpop.f32.mrf.mxu0
        %v845 = vadd.f32 0.0, %v844
        %846 = vmatprep.mubr.f32.mxu0 0.0
        %847 = vmatmul.mubr.f32.gmra.mxu0 %v471
        %v848 = vpop.f32.mrf.mxu0
        %v849 = vadd.f32 0.0, %v848
        %v850 = vpop.f32.mrf.mxu0
        %v851 = vadd.f32 0.0, %v850
        %852 = vmatprep.mubr.f32.mxu0 0.0
        %853 = vmatmul.mubr.f32.gmra.mxu0 %v472
        %v854 = vpop.f32.mrf.mxu0
        %v855 = vadd.f32 0.0, %v854
        %v856 = vpop.f32.mrf.mxu0
        %v857 = vadd.f32 0.0, %v856
        %858 = vdwg.mxu0
        %859 = vmatprep.subr.mxu0 %v583
        %860 = vmatpush1.msra.mxu0 %v582
        %861 = vmatprep.subr.mxu0 %v576
        %862 = vmatpush1.msra.mxu0 %v575
        %863 = vmatprep.subr.mxu0 %v569
        %864 = vmatpush1.msra.mxu0 %v568
        %865 = vmatprep.subr.mxu0 %v562
        %866 = vmatpush1.msra.mxu0 %v561
        %867 = vmatprep.subr.mxu0 %v555
        %868 = vmatpush1.msra.mxu0 %v554
        %869 = vmatprep.subr.mxu0 %v548
        %870 = vmatpush1.msra.mxu0 %v547
        %871 = vmatprep.subr.mxu0 %v541
        %872 = vmatpush1.msra.mxu0 %v540
        %873 = vmatprep.subr.mxu0 %v534
        %874 = vmatpush1.msra.mxu0 %v533
        %875 = vmatprep.subr.mxu0 %v527
        %876 = vmatpush1.msra.mxu0 %v526
        %877 = vmatprep.subr.mxu0 %v520
        %878 = vmatpush1.msra.mxu0 %v519
        %879 = vmatprep.subr.mxu0 %v513
        %880 = vmatpush1.msra.mxu0 %v512
        %881 = vmatprep.subr.mxu0 %v506
        %882 = vmatpush1.msra.mxu0 %v505
        %883 = vmatprep.subr.mxu0 %v499
        %884 = vmatpush1.msra.mxu0 %v498
        %885 = vmatprep.subr.mxu0 %v492
        %886 = vmatpush1.msra.mxu0 %v491
        %887 = vmatprep.subr.mxu0 %v485
        %888 = vmatpush1.msra.mxu0 %v484
        %889 = vmatprep.subr.mxu0 %v478
        %890 = vmatpush1.msra.mxu0 %v477
        %891 = vmatprep.subr.mxu0 0.0
        %892 = vmatpush2.msra.mxu0 0.0
        %893 = vmatprep.subr.mxu0 0.0
        %894 = vmatpush2.msra.mxu0 0.0
        %895 = vmatprep.subr.mxu0 0.0
        %896 = vmatpush2.msra.mxu0 0.0
        %897 = vmatprep.subr.mxu0 0.0
        %898 = vmatpush2.msra.mxu0 0.0
        %899 = vmatprep.subr.mxu0 0.0
        %900 = vmatpush2.msra.mxu0 0.0
        %901 = vmatprep.subr.mxu0 0.0
        %902 = vmatpush2.msra.mxu0 0.0
        %903 = vmatprep.subr.mxu0 0.0
        %904 = vmatpush2.msra.mxu0 0.0
        %905 = vmatprep.subr.mxu0 0.0
        %906 = vmatpush2.msra.mxu0 0.0
        %907 = vmatprep.subr.mxu0 0.0
        %908 = vmatpush2.msra.mxu0 0.0
        %909 = vmatprep.subr.mxu0 0.0
        %910 = vmatpush2.msra.mxu0 0.0
        %911 = vmatprep.subr.mxu0 0.0
        %912 = vmatpush2.msra.mxu0 0.0
        %913 = vmatprep.subr.mxu0 0.0
        %914 = vmatpush2.msra.mxu0 0.0
        %915 = vmatprep.subr.mxu0 0.0
        %916 = vmatpush2.msra.mxu0 0.0
        %917 = vmatprep.subr.mxu0 0.0
        %918 = vmatpush2.msra.mxu0 0.0
        %919 = vmatprep.subr.mxu0 0.0
        %920 = vmatpush2.msra.mxu0 0.0
        %921 = vmatprep.subr.mxu0 0.0
        %922 = vmatpush2.msra.mxu0 0.0
        %923 = vmatprep.mubr.f32.mxu0 0.0
        %924 = vmatmul.mubr.f32.gmra.mxu0 %v461
        %v925 = vpop.f32.mrf.mxu0
        %v926 = vadd.f32 0.0, %v925
        %v927 = vpop.f32.mrf.mxu0
        %v928 = vadd.f32 0.0, %v927
        %929 = vmatprep.mubr.f32.mxu0 0.0
        %930 = vmatmul.mubr.f32.gmra.mxu0 %v462
        %v931 = vpop.f32.mrf.mxu0
        %v932 = vadd.f32 0.0, %v931
        %v933 = vpop.f32.mrf.mxu0
        %v934 = vadd.f32 0.0, %v933
        %935 = vmatprep.mubr.f32.mxu0 0.0
        %936 = vmatmul.mubr.f32.gmra.mxu0 %v463
        %v937 = vpop.f32.mrf.mxu0
        %v938 = vadd.f32 0.0, %v937
        %v939 = vpop.f32.mrf.mxu0
        %v940 = vadd.f32 0.0, %v939
        %941 = vmatprep.mubr.f32.mxu0 0.0
        %942 = vmatmul.mubr.f32.gmra.mxu0 %v464
        %v943 = vpop.f32.mrf.mxu0
        %v944 = vadd.f32 0.0, %v943
        %v945 = vpop.f32.mrf.mxu0
        %v946 = vadd.f32 0.0, %v945
        %947 = vmatprep.mubr.f32.mxu0 0.0
        %948 = vmatmul.mubr.f32.gmra.mxu0 %v465
        %v949 = vpop.f32.mrf.mxu0
        %v950 = vadd.f32 0.0, %v949
        %v951 = vpop.f32.mrf.mxu0
        %v952 = vadd.f32 0.0, %v951
        %953 = vmatprep.mubr.f32.mxu0 0.0
        %954 = vmatmul.mubr.f32.gmra.mxu0 %v466
        %v955 = vpop.f32.mrf.mxu0
        %v956 = vadd.f32 0.0, %v955
        %v957 = vpop.f32.mrf.mxu0
        %v958 = vadd.f32 0.0, %v957
        %959 = vmatprep.mubr.f32.mxu0 0.0
        %960 = vmatmul.mubr.f32.gmra.mxu0 %v467
        %v961 = vpop.f32.mrf.mxu0
        %v962 = vadd.f32 0.0, %v961
        %v963 = vpop.f32.mrf.mxu0
        %v964 = vadd.f32 0.0, %v963
        %965 = vmatprep.mubr.f32.mxu0 0.0
        %966 = vmatmul.mubr.f32.gmra.mxu0 %v468
        %v967 = vpop.f32.mrf.mxu0
        %v968 = vadd.f32 0.0, %v967
        %v969 = vpop.f32.mrf.mxu0
        %v970 = vadd.f32 0.0, %v969
        %971 = vmatprep.mubr.f32.mxu0 0.0
        %972 = vmatmul.mubr.f32.gmra.mxu0 %v469
        %v973 = vpop.f32.mrf.mxu0
        %v974 = vadd.f32 0.0, %v973
        %v975 = vpop.f32.mrf.mxu0
        %v976 = vadd.f32 0.0, %v975
        %977 = vmatprep.mubr.f32.mxu0 0.0
        %978 = vmatmul.mubr.f32.gmra.mxu0 %v470
        %v979 = vpop.f32.mrf.mxu0
        %v980 = vadd.f32 0.0, %v979
        %v981 = vpop.f32.mrf.mxu0
        %v982 = vadd.f32 0.0, %v981
        %983 = vmatprep.mubr.f32.mxu0 0.0
        %984 = vmatmul.mubr.f32.gmra.mxu0 %v471
        %v985 = vpop.f32.mrf.mxu0
        %v986 = vadd.f32 0.0, %v985
        %v987 = vpop.f32.mrf.mxu0
        %v988 = vadd.f32 0.0, %v987
        %989 = vmatprep.mubr.f32.mxu0 0.0
        %990 = vmatmul.mubr.f32.gmra.mxu0 %v472
        %v991 = vpop.f32.mrf.mxu0
        %v992 = vadd.f32 0.0, %v991
        %v993 = vpop.f32.mrf.mxu0
        %v994 = vadd.f32 0.0, %v993
        %995 = vdwg.mxu0
        %996 = vmatprep.subr.mxu0 0.0
        %997 = vmatpush1.msra.mxu0 %v584
        %998 = vmatprep.subr.mxu0 0.0
        %999 = vmatpush1.msra.mxu0 %v577
        %1000 = vmatprep.subr.mxu0 0.0
        %1001 = vmatpush1.msra.mxu0 %v570
        %1002 = vmatprep.subr.mxu0 0.0
        %1003 = vmatpush1.msra.mxu0 %v563
        %1004 = vmatprep.subr.mxu0 0.0
        %1005 = vmatpush1.msra.mxu0 %v556
        %1006 = vmatprep.subr.mxu0 0.0
        %1007 = vmatpush1.msra.mxu0 %v549
        %1008 = vmatprep.subr.mxu0 0.0
        %1009 = vmatpush1.msra.mxu0 %v542
        %1010 = vmatprep.subr.mxu0 0.0
        %1011 = vmatpush1.msra.mxu0 %v535
        %1012 = vmatprep.subr.mxu0 0.0
        %1013 = vmatpush1.msra.mxu0 %v528
        %1014 = vmatprep.subr.mxu0 0.0
        %1015 = vmatpush1.msra.mxu0 %v521
        %1016 = vmatprep.subr.mxu0 0.0
        %1017 = vmatpush1.msra.mxu0 %v514
        %1018 = vmatprep.subr.mxu0 0.0
        %1019 = vmatpush1.msra.mxu0 %v507
        %1020 = vmatprep.subr.mxu0 0.0
        %1021 = vmatpush1.msra.mxu0 %v500
        %1022 = vmatprep.subr.mxu0 0.0
        %1023 = vmatpush1.msra.mxu0 %v493
        %1024 = vmatprep.subr.mxu0 0.0
        %1025 = vmatpush1.msra.mxu0 %v486
        %1026 = vmatprep.subr.mxu0 0.0
        %1027 = vmatpush1.msra.mxu0 %v479
        %1028 = vmatprep.subr.mxu0 0.0
        %1029 = vmatpush2.msra.mxu0 0.0
        %1030 = vmatprep.subr.mxu0 0.0
        %1031 = vmatpush2.msra.mxu0 0.0
        %1032 = vmatprep.subr.mxu0 0.0
        %1033 = vmatpush2.msra.mxu0 0.0
        %1034 = vmatprep.subr.mxu0 0.0
        %1035 = vmatpush2.msra.mxu0 0.0
        %1036 = vmatprep.subr.mxu0 0.0
        %1037 = vmatpush2.msra.mxu0 0.0
        %1038 = vmatprep.subr.mxu0 0.0
        %1039 = vmatpush2.msra.mxu0 0.0
        %1040 = vmatprep.subr.mxu0 0.0
        %1041 = vmatpush2.msra.mxu0 0.0
        %1042 = vmatprep.subr.mxu0 0.0
        %1043 = vmatpush2.msra.mxu0 0.0
        %1044 = vmatprep.subr.mxu0 0.0
        %1045 = vmatpush2.msra.mxu0 0.0
        %1046 = vmatprep.subr.mxu0 0.0
        %1047 = vmatpush2.msra.mxu0 0.0
        %1048 = vmatprep.subr.mxu0 0.0
        %1049 = vmatpush2.msra.mxu0 0.0
        %1050 = vmatprep.subr.mxu0 0.0
        %1051 = vmatpush2.msra.mxu0 0.0
        %1052 = vmatprep.subr.mxu0 0.0
        %1053 = vmatpush2.msra.mxu0 0.0
        %1054 = vmatprep.subr.mxu0 0.0
        %1055 = vmatpush2.msra.mxu0 0.0
        %1056 = vmatprep.subr.mxu0 0.0
        %1057 = vmatpush2.msra.mxu0 0.0
        %1058 = vmatprep.subr.mxu0 0.0
        %1059 = vmatpush2.msra.mxu0 0.0
        %1060 = vmatprep.mubr.f32.mxu0 0.0
        %1061 = vmatmul.mubr.f32.gmra.mxu0 %v461
        %v1062 = vpop.f32.mrf.mxu0
        %v1063 = vadd.f32 0.0, %v1062
        %v1064 = vpop.f32.mrf.mxu0
        %1065 = vmatprep.mubr.f32.mxu0 0.0
        %1066 = vmatmul.mubr.f32.gmra.mxu0 %v462
        %v1067 = vpop.f32.mrf.mxu0
        %v1068 = vadd.f32 0.0, %v1067
        %v1069 = vpop.f32.mrf.mxu0
        %1070 = vmatprep.mubr.f32.mxu0 0.0
        %1071 = vmatmul.mubr.f32.gmra.mxu0 %v463
        %v1072 = vpop.f32.mrf.mxu0
        %v1073 = vadd.f32 0.0, %v1072
        %v1074 = vpop.f32.mrf.mxu0
        %1075 = vmatprep.mubr.f32.mxu0 0.0
        %1076 = vmatmul.mubr.f32.gmra.mxu0 %v464
        %v1077 = vpop.f32.mrf.mxu0
        %v1078 = vadd.f32 0.0, %v1077
        %v1079 = vpop.f32.mrf.mxu0
        %1080 = vmatprep.mubr.f32.mxu0 0.0
        %1081 = vmatmul.mubr.f32.gmra.mxu0 %v465
        %v1082 = vpop.f32.mrf.mxu0
        %v1083 = vadd.f32 0.0, %v1082
        %v1084 = vpop.f32.mrf.mxu0
        %1085 = vmatprep.mubr.f32.mxu0 0.0
        %1086 = vmatmul.mubr.f32.gmra.mxu0 %v466
        %v1087 = vpop.f32.mrf.mxu0
        %v1088 = vadd.f32 0.0, %v1087
        %v1089 = vpop.f32.mrf.mxu0
        %1090 = vmatprep.mubr.f32.mxu0 0.0
        %1091 = vmatmul.mubr.f32.gmra.mxu0 %v467
        %v1092 = vpop.f32.mrf.mxu0
        %v1093 = vadd.f32 0.0, %v1092
        %v1094 = vpop.f32.mrf.mxu0
        %1095 = vmatprep.mubr.f32.mxu0 0.0
        %1096 = vmatmul.mubr.f32.gmra.mxu0 %v468
        %v1097 = vpop.f32.mrf.mxu0
        %v1098 = vadd.f32 0.0, %v1097
        %v1099 = vpop.f32.mrf.mxu0
        %1100 = vmatprep.mubr.f32.mxu0 0.0
        %1101 = vmatmul.mubr.f32.gmra.mxu0 %v469
        %v1102 = vpop.f32.mrf.mxu0
        %v1103 = vadd.f32 0.0, %v1102
        %v1104 = vpop.f32.mrf.mxu0
        %1105 = vmatprep.mubr.f32.mxu0 0.0
        %1106 = vmatmul.mubr.f32.gmra.mxu0 %v470
        %v1107 = vpop.f32.mrf.mxu0
        %v1108 = vadd.f32 0.0, %v1107
        %v1109 = vpop.f32.mrf.mxu0
        %1110 = vmatprep.mubr.f32.mxu0 0.0
        %1111 = vmatmul.mubr.f32.gmra.mxu0 %v471
        %v1112 = vpop.f32.mrf.mxu0
        %v1113 = vadd.f32 0.0, %v1112
        %v1114 = vpop.f32.mrf.mxu0
        %1115 = vmatprep.mubr.f32.mxu0 0.0
        %1116 = vmatmul.mubr.f32.gmra.mxu0 %v472
        %v1117 = vpop.f32.mrf.mxu0
        %v1118 = vadd.f32 0.0, %v1117
        %v1119 = vpop.f32.mrf.mxu0
        %1120 = vdwg.mxu0
        %v1121 = vadd.f32 %v377, %v652
        %v1122 = vadd.f32 %v378, %v654
        %v1123 = vadd.f32 %v379, %v789
        %v1124 = vadd.f32 %v380, %v791
        %v1125 = vadd.f32 %v381, %v926
        %v1126 = vadd.f32 %v382, %v928
        %v1127 = vadd.f32 %v383, %v1063
        %v1128 = vadd.f32 %v384, %v658
        %v1129 = vadd.f32 %v385, %v660
        %v1130 = vadd.f32 %v386, %v795
        %v1131 = vadd.f32 %v387, %v797
        %v1132 = vadd.f32 %v388, %v932
        %v1133 = vadd.f32 %v389, %v934
        %v1134 = vadd.f32 %v390, %v1068
        %v1135 = vadd.f32 %v391, %v664
        %v1136 = vadd.f32 %v392, %v666
        %v1137 = vadd.f32 %v393, %v801
        %v1138 = vadd.f32 %v394, %v803
        %v1139 = vadd.f32 %v395, %v938
        %v1140 = vadd.f32 %v396, %v940
        %v1141 = vadd.f32 %v397, %v1073
        %v1142 = vadd.f32 %v398, %v670
        %v1143 = vadd.f32 %v399, %v672
        %v1144 = vadd.f32 %v400, %v807
        %v1145 = vadd.f32 %v401, %v809
        %v1146 = vadd.f32 %v402, %v944
        %v1147 = vadd.f32 %v403, %v946
        %v1148 = vadd.f32 %v404, %v1078
        %v1149 = vadd.f32 %v405, %v676
        %v1150 = vadd.f32 %v406, %v678
        %v1151 = vadd.f32 %v407, %v813
        %v1152 = vadd.f32 %v408, %v815
        %v1153 = vadd.f32 %v409, %v950
        %v1154 = vadd.f32 %v410, %v952
        %v1155 = vadd.f32 %v411, %v1083
        %v1156 = vadd.f32 %v412, %v682
        %v1157 = vadd.f32 %v413, %v684
        %v1158 = vadd.f32 %v414, %v819
        %v1159 = vadd.f32 %v415, %v821
        %v1160 = vadd.f32 %v416, %v956
        %v1161 = vadd.f32 %v417, %v958
        %v1162 = vadd.f32 %v418, %v1088
        %v1163 = vadd.f32 %v419, %v688
        %v1164 = vadd.f32 %v420, %v690
        %v1165 = vadd.f32 %v421, %v825
        %v1166 = vadd.f32 %v422, %v827
        %v1167 = vadd.f32 %v423, %v962
        %v1168 = vadd.f32 %v424, %v964
        %v1169 = vadd.f32 %v425, %v1093
        %v1170 = vadd.f32 %v426, %v694
        %v1171 = vadd.f32 %v427, %v696
        %v1172 = vadd.f32 %v428, %v831
        %v1173 = vadd.f32 %v429, %v833
        %v1174 = vadd.f32 %v430, %v968
        %v1175 = vadd.f32 %v431, %v970
        %v1176 = vadd.f32 %v432, %v1098
        %v1177 = vadd.f32 %v433, %v700
        %v1178 = vadd.f32 %v434, %v702
        %v1179 = vadd.f32 %v435, %v837
        %v1180 = vadd.f32 %v436, %v839
        %v1181 = vadd.f32 %v437, %v974
        %v1182 = vadd.f32 %v438, %v976
        %v1183 = vadd.f32 %v439, %v1103
        %v1184 = vadd.f32 %v440, %v706
        %v1185 = vadd.f32 %v441, %v708
        %v1186 = vadd.f32 %v442, %v843
        %v1187 = vadd.f32 %v443, %v845
        %v1188 = vadd.f32 %v444, %v980
        %v1189 = vadd.f32 %v445, %v982
        %v1190 = vadd.f32 %v446, %v1108
        %v1191 = vadd.f32 %v447, %v712
        %v1192 = vadd.f32 %v448, %v714
        %v1193 = vadd.f32 %v449, %v849
        %v1194 = vadd.f32 %v450, %v851
        %v1195 = vadd.f32 %v451, %v986
        %v1196 = vadd.f32 %v452, %v988
        %v1197 = vadd.f32 %v453, %v1113
        %v1198 = vadd.f32 %v454, %v718
        %v1199 = vadd.f32 %v455, %v720
        %v1200 = vadd.f32 %v456, %v855
        %v1201 = vadd.f32 %v457, %v857
        %v1202 = vadd.f32 %v458, %v992
        %v1203 = vadd.f32 %v459, %v994
        %v1204 = vadd.f32 %v460, %v1118
        %1205 = vst [vmem:[#allocation3] sm:$0xff] %v1121
        %1206 = vst [vmem:[#allocation3 + $0x8] sm:$0xff] %v1122
        %1207 = vst [vmem:[#allocation3 + $0x10] sm:$0xff] %v1123
        %1208 = vst [vmem:[#allocation3 + $0x18] sm:$0xff] %v1124
        %1209 = vst [vmem:[#allocation3 + $0x20] sm:$0xff] %v1125
        %1210 = vst [vmem:[#allocation3 + $0x28] sm:$0xff] %v1126
        %vm1211 = vcmask 130048
        %1212 = vst.msk [vmem:[#allocation3 + $0x30] sm:$0xff] %vm1211, %v1127
        %1213 = vst [vmem:[#allocation3 + $0x38] sm:$0xff] %v1128
        %1214 = vst [vmem:[#allocation3 + $0x40] sm:$0xff] %v1129
        %1215 = vst [vmem:[#allocation3 + $0x48] sm:$0xff] %v1130
        %1216 = vst [vmem:[#allocation3 + $0x50] sm:$0xff] %v1131
        %1217 = vst [vmem:[#allocation3 + $0x58] sm:$0xff] %v1132
        %1218 = vst [vmem:[#allocation3 + $0x60] sm:$0xff] %v1133
        %1219 = vst.msk [vmem:[#allocation3 + $0x68] sm:$0xff] %vm1211, %v1134
        %1220 = vst [vmem:[#allocation3 + $0x70] sm:$0xff] %v1135
        %1221 = vst [vmem:[#allocation3 + $0x78] sm:$0xff] %v1136
        %1222 = vst [vmem:[#allocation3 + $0x80] sm:$0xff] %v1137
        %1223 = vst [vmem:[#allocation3 + $0x88] sm:$0xff] %v1138
        %1224 = vst [vmem:[#allocation3 + $0x90] sm:$0xff] %v1139
        %1225 = vst [vmem:[#allocation3 + $0x98] sm:$0xff] %v1140
        %1226 = vst.msk [vmem:[#allocation3 + $0xa0] sm:$0xff] %vm1211, %v1141
        %1227 = vst [vmem:[#allocation3 + $0xa8] sm:$0xff] %v1142
        %1228 = vst [vmem:[#allocation3 + $0xb0] sm:$0xff] %v1143
        %1229 = vst [vmem:[#allocation3 + $0xb8] sm:$0xff] %v1144
        %1230 = vst [vmem:[#allocation3 + $0xc0] sm:$0xff] %v1145
        %1231 = vst [vmem:[#allocation3 + $0xc8] sm:$0xff] %v1146
        %1232 = vst [vmem:[#allocation3 + $0xd0] sm:$0xff] %v1147
        %1233 = vst.msk [vmem:[#allocation3 + $0xd8] sm:$0xff] %vm1211, %v1148
        %1234 = vst [vmem:[#allocation3 + $0xe0] sm:$0xff] %v1149
        %1235 = vst [vmem:[#allocation3 + $0xe8] sm:$0xff] %v1150
        %1236 = vst [vmem:[#allocation3 + $0xf0] sm:$0xff] %v1151
        %1237 = vst [vmem:[#allocation3 + $0xf8] sm:$0xff] %v1152
        %1238 = vst [vmem:[#allocation3 + $0x100] sm:$0xff] %v1153
        %1239 = vst [vmem:[#allocation3 + $0x108] sm:$0xff] %v1154
        %1240 = vst.msk [vmem:[#allocation3 + $0x110] sm:$0xff] %vm1211, %v1155
        %1241 = vst [vmem:[#allocation3 + $0x118] sm:$0xff] %v1156
        %1242 = vst [vmem:[#allocation3 + $0x120] sm:$0xff] %v1157
        %1243 = vst [vmem:[#allocation3 + $0x128] sm:$0xff] %v1158
        %1244 = vst [vmem:[#allocation3 + $0x130] sm:$0xff] %v1159
        %1245 = vst [vmem:[#allocation3 + $0x138] sm:$0xff] %v1160
        %1246 = vst [vmem:[#allocation3 + $0x140] sm:$0xff] %v1161
        %1247 = vst.msk [vmem:[#allocation3 + $0x148] sm:$0xff] %vm1211, %v1162
        %1248 = vst [vmem:[#allocation3 + $0x150] sm:$0xff] %v1163
        %1249 = vst [vmem:[#allocation3 + $0x158] sm:$0xff] %v1164
        %1250 = vst [vmem:[#allocation3 + $0x160] sm:$0xff] %v1165
        %1251 = vst [vmem:[#allocation3 + $0x168] sm:$0xff] %v1166
        %1252 = vst [vmem:[#allocation3 + $0x170] sm:$0xff] %v1167
        %1253 = vst [vmem:[#allocation3 + $0x178] sm:$0xff] %v1168
        %1254 = vst.msk [vmem:[#allocation3 + $0x180] sm:$0xff] %vm1211, %v1169
        %1255 = vst [vmem:[#allocation3 + $0x188] sm:$0xff] %v1170
        %1256 = vst [vmem:[#allocation3 + $0x190] sm:$0xff] %v1171
        %1257 = vst [vmem:[#allocation3 + $0x198] sm:$0xff] %v1172
        %1258 = vst [vmem:[#allocation3 + $0x1a0] sm:$0xff] %v1173
        %1259 = vst [vmem:[#allocation3 + $0x1a8] sm:$0xff] %v1174
        %1260 = vst [vmem:[#allocation3 + $0x1b0] sm:$0xff] %v1175
        %1261 = vst.msk [vmem:[#allocation3 + $0x1b8] sm:$0xff] %vm1211, %v1176
        %1262 = vst [vmem:[#allocation3 + $0x1c0] sm:$0xff] %v1177
        %1263 = vst [vmem:[#allocation3 + $0x1c8] sm:$0xff] %v1178
        %1264 = vst [vmem:[#allocation3 + $0x1d0] sm:$0xff] %v1179
        %1265 = vst [vmem:[#allocation3 + $0x1d8] sm:$0xff] %v1180
        %1266 = vst [vmem:[#allocation3 + $0x1e0] sm:$0xff] %v1181
        %1267 = vst [vmem:[#allocation3 + $0x1e8] sm:$0xff] %v1182
        %1268 = vst.msk [vmem:[#allocation3 + $0x1f0] sm:$0xff] %vm1211, %v1183
        %1269 = vst [vmem:[#allocation3 + $0x1f8] sm:$0xff] %v1184
        %1270 = vst [vmem:[#allocation3 + $0x200] sm:$0xff] %v1185
        %1271 = vst [vmem:[#allocation3 + $0x208] sm:$0xff] %v1186
        %1272 = vst [vmem:[#allocation3 + $0x210] sm:$0xff] %v1187
        %1273 = vst [vmem:[#allocation3 + $0x218] sm:$0xff] %v1188
        %1274 = vst [vmem:[#allocation3 + $0x220] sm:$0xff] %v1189
        %1275 = vst.msk [vmem:[#allocation3 + $0x228] sm:$0xff] %vm1211, %v1190
        %1276 = vst [vmem:[#allocation3 + $0x230] sm:$0xff] %v1191
        %1277 = vst [vmem:[#allocation3 + $0x238] sm:$0xff] %v1192
        %1278 = vst [vmem:[#allocation3 + $0x240] sm:$0xff] %v1193
        %1279 = vst [vmem:[#allocation3 + $0x248] sm:$0xff] %v1194
        %1280 = vst [vmem:[#allocation3 + $0x250] sm:$0xff] %v1195
        %1281 = vst [vmem:[#allocation3 + $0x258] sm:$0xff] %v1196
        %1282 = vst.msk [vmem:[#allocation3 + $0x260] sm:$0xff] %vm1211, %v1197
        %1283 = vst [vmem:[#allocation3 + $0x268] sm:$0xff] %v1198
        %1284 = vst [vmem:[#allocation3 + $0x270] sm:$0xff] %v1199
        %1285 = vst [vmem:[#allocation3 + $0x278] sm:$0xff] %v1200
        %1286 = vst [vmem:[#allocation3 + $0x280] sm:$0xff] %v1201
        %1287 = vst [vmem:[#allocation3 + $0x288] sm:$0xff] %v1202
        %1288 = vst [vmem:[#allocation3 + $0x290] sm:$0xff] %v1203
        %1289 = vst.msk [vmem:[#allocation3 + $0x298] sm:$0xff] %vm1211, %v1204
        %p1290 = scmp.eq.s32.totalorder %s16, 2
        // Predicated region
        $region79: #{tpu_custom_call.1} parent=69 // pred_check
          %p1291 = pneg %p1290
        $region80: #{tpu_custom_call.1} parent=69 // pred_check_branch
          %1293 = sbr.rel (%p1291) target = $region82
        $region81: #{tpu_custom_call.1} parent=69 // pred_region
          %v1294 = vld [vmem:[#allocation3] sm:$0xff]
          %v1295 = vld [vmem:[#allocation3 + $0x8] sm:$0xff]
          %v1296 = vld [vmem:[#allocation3 + $0x10] sm:$0xff]
          %v1297 = vld [vmem:[#allocation3 + $0x18] sm:$0xff]
          %v1298 = vld [vmem:[#allocation3 + $0x20] sm:$0xff]
          %v1299 = vld [vmem:[#allocation3 + $0x28] sm:$0xff]
          %v1300 = vld [vmem:[#allocation3 + $0x30] sm:$0xff]
          %v1301 = vld [vmem:[#allocation3 + $0x38] sm:$0xff]
          %v1302 = vld [vmem:[#allocation3 + $0x40] sm:$0xff]
          %v1303 = vld [vmem:[#allocation3 + $0x48] sm:$0xff]
          %v1304 = vld [vmem:[#allocation3 + $0x50] sm:$0xff]
          %v1305 = vld [vmem:[#allocation3 + $0x58] sm:$0xff]
          %v1306 = vld [vmem:[#allocation3 + $0x60] sm:$0xff]
          %v1307 = vld [vmem:[#allocation3 + $0x68] sm:$0xff]
          %v1308 = vld [vmem:[#allocation3 + $0x70] sm:$0xff]
          %v1309 = vld [vmem:[#allocation3 + $0x78] sm:$0xff]
          %v1310 = vld [vmem:[#allocation3 + $0x80] sm:$0xff]
          %v1311 = vld [vmem:[#allocation3 + $0x88] sm:$0xff]
          %v1312 = vld [vmem:[#allocation3 + $0x90] sm:$0xff]
          %v1313 = vld [vmem:[#allocation3 + $0x98] sm:$0xff]
          %v1314 = vld [vmem:[#allocation3 + $0xa0] sm:$0xff]
          %v1315 = vld [vmem:[#allocation3 + $0xa8] sm:$0xff]
          %v1316 = vld [vmem:[#allocation3 + $0xb0] sm:$0xff]
          %v1317 = vld [vmem:[#allocation3 + $0xb8] sm:$0xff]
          %v1318 = vld [vmem:[#allocation3 + $0xc0] sm:$0xff]
          %v1319 = vld [vmem:[#allocation3 + $0xc8] sm:$0xff]
          %v1320 = vld [vmem:[#allocation3 + $0xd0] sm:$0xff]
          %v1321 = vld [vmem:[#allocation3 + $0xd8] sm:$0xff]
          %v1322 = vld [vmem:[#allocation3 + $0xe0] sm:$0xff]
          %v1323 = vld [vmem:[#allocation3 + $0xe8] sm:$0xff]
          %v1324 = vld [vmem:[#allocation3 + $0xf0] sm:$0xff]
          %v1325 = vld [vmem:[#allocation3 + $0xf8] sm:$0xff]
          %v1326 = vld [vmem:[#allocation3 + $0x100] sm:$0xff]
          %v1327 = vld [vmem:[#allocation3 + $0x108] sm:$0xff]
          %v1328 = vld [vmem:[#allocation3 + $0x110] sm:$0xff]
          %v1329 = vld [vmem:[#allocation3 + $0x118] sm:$0xff]
          %v1330 = vld [vmem:[#allocation3 + $0x120] sm:$0xff]
          %v1331 = vld [vmem:[#allocation3 + $0x128] sm:$0xff]
          %v1332 = vld [vmem:[#allocation3 + $0x130] sm:$0xff]
          %v1333 = vld [vmem:[#allocation3 + $0x138] sm:$0xff]
          %v1334 = vld [vmem:[#allocation3 + $0x140] sm:$0xff]
          %v1335 = vld [vmem:[#allocation3 + $0x148] sm:$0xff]
          %v1336 = vld [vmem:[#allocation3 + $0x150] sm:$0xff]
          %v1337 = vld [vmem:[#allocation3 + $0x158] sm:$0xff]
          %v1338 = vld [vmem:[#allocation3 + $0x160] sm:$0xff]
          %v1339 = vld [vmem:[#allocation3 + $0x168] sm:$0xff]
          %v1340 = vld [vmem:[#allocation3 + $0x170] sm:$0xff]
          %v1341 = vld [vmem:[#allocation3 + $0x178] sm:$0xff]
          %v1342 = vld [vmem:[#allocation3 + $0x180] sm:$0xff]
          %v1343 = vld [vmem:[#allocation3 + $0x188] sm:$0xff]
          %v1344 = vld [vmem:[#allocation3 + $0x190] sm:$0xff]
          %v1345 = vld [vmem:[#allocation3 + $0x198] sm:$0xff]
          %v1346 = vld [vmem:[#allocation3 + $0x1a0] sm:$0xff]
          %v1347 = vld [vmem:[#allocation3 + $0x1a8] sm:$0xff]
          %v1348 = vld [vmem:[#allocation3 + $0x1b0] sm:$0xff]
          %v1349 = vld [vmem:[#allocation3 + $0x1b8] sm:$0xff]
          %v1350 = vld [vmem:[#allocation3 + $0x1c0] sm:$0xff]
          %v1351 = vld [vmem:[#allocation3 + $0x1c8] sm:$0xff]
          %v1352 = vld [vmem:[#allocation3 + $0x1d0] sm:$0xff]
          %v1353 = vld [vmem:[#allocation3 + $0x1d8] sm:$0xff]
          %v1354 = vld [vmem:[#allocation3 + $0x1e0] sm:$0xff]
          %v1355 = vld [vmem:[#allocation3 + $0x1e8] sm:$0xff]
          %v1356 = vld [vmem:[#allocation3 + $0x1f0] sm:$0xff]
          %v1357 = vld [vmem:[#allocation3 + $0x1f8] sm:$0xff]
          %v1358 = vld [vmem:[#allocation3 + $0x200] sm:$0xff]
          %v1359 = vld [vmem:[#allocation3 + $0x208] sm:$0xff]
          %v1360 = vld [vmem:[#allocation3 + $0x210] sm:$0xff]
          %v1361 = vld [vmem:[#allocation3 + $0x218] sm:$0xff]
          %v1362 = vld [vmem:[#allocation3 + $0x220] sm:$0xff]
          %v1363 = vld [vmem:[#allocation3 + $0x228] sm:$0xff]
          %v1364 = vld [vmem:[#allocation3 + $0x230] sm:$0xff]
          %v1365 = vld [vmem:[#allocation3 + $0x238] sm:$0xff]
          %v1366 = vld [vmem:[#allocation3 + $0x240] sm:$0xff]
          %v1367 = vld [vmem:[#allocation3 + $0x248] sm:$0xff]
          %v1368 = vld [vmem:[#allocation3 + $0x250] sm:$0xff]
          %v1369 = vld [vmem:[#allocation3 + $0x258] sm:$0xff]
          %v1370 = vld [vmem:[#allocation3 + $0x260] sm:$0xff]
          %v1371 = vld [vmem:[#allocation3 + $0x268] sm:$0xff]
          %v1372 = vld [vmem:[#allocation3 + $0x270] sm:$0xff]
          %v1373 = vld [vmem:[#allocation3 + $0x278] sm:$0xff]
          %v1374 = vld [vmem:[#allocation3 + $0x280] sm:$0xff]
          %v1375 = vld [vmem:[#allocation3 + $0x288] sm:$0xff]
          %v1376 = vld [vmem:[#allocation3 + $0x290] sm:$0xff]
          %v1377 = vld [vmem:[#allocation3 + $0x298] sm:$0xff]
          %v1378 = vadd.f32 %v1294, %v1295
          %v1379 = vadd.f32 %v1378, %v1296
          %v1380 = vadd.f32 %v1379, %v1297
          %v1381 = vadd.f32 %v1380, %v1298
          %v1382 = vadd.f32 %v1381, %v1299
          %v1383 = vsel %vm1211, %v1300, 0.0
          %v1384 = vadd.f32 %v1382, %v1383
          %1385 = vadd.xlane.f32.xlu0 %v1384
          %v1386 = vpop.xlane.xlu0 %1385
          %v1387 = vadd.f32 %v1301, %v1302
          %v1388 = vadd.f32 %v1387, %v1303
          %v1389 = vadd.f32 %v1388, %v1304
          %v1390 = vadd.f32 %v1389, %v1305
          %v1391 = vadd.f32 %v1390, %v1306
          %v1392 = vsel %vm1211, %v1307, 0.0
          %v1393 = vadd.f32 %v1391, %v1392
          %1394 = vadd.xlane.f32.xlu0 %v1393
          %v1395 = vpop.xlane.xlu0 %1394
          %v1396 = vadd.f32 %v1308, %v1309
          %v1397 = vadd.f32 %v1396, %v1310
          %v1398 = vadd.f32 %v1397, %v1311
          %v1399 = vadd.f32 %v1398, %v1312
          %v1400 = vadd.f32 %v1399, %v1313
          %v1401 = vsel %vm1211, %v1314, 0.0
          %v1402 = vadd.f32 %v1400, %v1401
          %1403 = vadd.xlane.f32.xlu0 %v1402
          %v1404 = vpop.xlane.xlu0 %1403
          %v1405 = vadd.f32 %v1315, %v1316
          %v1406 = vadd.f32 %v1405, %v1317
          %v1407 = vadd.f32 %v1406, %v1318
          %v1408 = vadd.f32 %v1407, %v1319
          %v1409 = vadd.f32 %v1408, %v1320
          %v1410 = vsel %vm1211, %v1321, 0.0
          %v1411 = vadd.f32 %v1409, %v1410
          %1412 = vadd.xlane.f32.xlu0 %v1411
          %v1413 = vpop.xlane.xlu0 %1412
          %v1414 = vadd.f32 %v1322, %v1323
          %v1415 = vadd.f32 %v1414, %v1324
          %v1416 = vadd.f32 %v1415, %v1325
          %v1417 = vadd.f32 %v1416, %v1326
          %v1418 = vadd.f32 %v1417, %v1327
          %v1419 = vsel %vm1211, %v1328, 0.0
          %v1420 = vadd.f32 %v1418, %v1419
          %1421 = vadd.xlane.f32.xlu0 %v1420
          %v1422 = vpop.xlane.xlu0 %1421
          %v1423 = vadd.f32 %v1329, %v1330
          %v1424 = vadd.f32 %v1423, %v1331
          %v1425 = vadd.f32 %v1424, %v1332
          %v1426 = vadd.f32 %v1425, %v1333
          %v1427 = vadd.f32 %v1426, %v1334
          %v1428 = vsel %vm1211, %v1335, 0.0
          %v1429 = vadd.f32 %v1427, %v1428
          %1430 = vadd.xlane.f32.xlu0 %v1429
          %v1431 = vpop.xlane.xlu0 %1430
          %v1432 = vadd.f32 %v1336, %v1337
          %v1433 = vadd.f32 %v1432, %v1338
          %v1434 = vadd.f32 %v1433, %v1339
          %v1435 = vadd.f32 %v1434, %v1340
          %v1436 = vadd.f32 %v1435, %v1341
          %v1437 = vsel %vm1211, %v1342, 0.0
          %v1438 = vadd.f32 %v1436, %v1437
          %1439 = vadd.xlane.f32.xlu0 %v1438
          %v1440 = vpop.xlane.xlu0 %1439
          %v1441 = vadd.f32 %v1343, %v1344
          %v1442 = vadd.f32 %v1441, %v1345
          %v1443 = vadd.f32 %v1442, %v1346
          %v1444 = vadd.f32 %v1443, %v1347
          %v1445 = vadd.f32 %v1444, %v1348
          %v1446 = vsel %vm1211, %v1349, 0.0
          %v1447 = vadd.f32 %v1445, %v1446
          %1448 = vadd.xlane.f32.xlu0 %v1447
          %v1449 = vpop.xlane.xlu0 %1448
          %v1450 = vadd.f32 %v1350, %v1351
          %v1451 = vadd.f32 %v1450, %v1352
          %v1452 = vadd.f32 %v1451, %v1353
          %v1453 = vadd.f32 %v1452, %v1354
          %v1454 = vadd.f32 %v1453, %v1355
          %v1455 = vsel %vm1211, %v1356, 0.0
          %v1456 = vadd.f32 %v1454, %v1455
          %1457 = vadd.xlane.f32.xlu0 %v1456
          %v1458 = vpop.xlane.xlu0 %1457
          %v1459 = vadd.f32 %v1357, %v1358
          %v1460 = vadd.f32 %v1459, %v1359
          %v1461 = vadd.f32 %v1460, %v1360
          %v1462 = vadd.f32 %v1461, %v1361
          %v1463 = vadd.f32 %v1462, %v1362
          %v1464 = vsel %vm1211, %v1363, 0.0
          %v1465 = vadd.f32 %v1463, %v1464
          %1466 = vadd.xlane.f32.xlu0 %v1465
          %v1467 = vpop.xlane.xlu0 %1466
          %v1468 = vadd.f32 %v1364, %v1365
          %v1469 = vadd.f32 %v1468, %v1366
          %v1470 = vadd.f32 %v1469, %v1367
          %v1471 = vadd.f32 %v1470, %v1368
          %v1472 = vadd.f32 %v1471, %v1369
          %v1473 = vsel %vm1211, %v1370, 0.0
          %v1474 = vadd.f32 %v1472, %v1473
          %1475 = vadd.xlane.f32.xlu0 %v1474
          %v1476 = vpop.xlane.xlu0 %1475
          %v1477 = vadd.f32 %v1371, %v1372
          %v1478 = vadd.f32 %v1477, %v1373
          %v1479 = vadd.f32 %v1478, %v1374
          %v1480 = vadd.f32 %v1479, %v1375
          %v1481 = vadd.f32 %v1480, %v1376
          %v1482 = vsel %vm1211, %v1377, 0.0
          %v1483 = vadd.f32 %v1481, %v1482
          %1484 = vadd.xlane.f32.xlu0 %v1483
          %v1485 = vpop.xlane.xlu0 %1484
          %v1486 = vmul.f32 %v1294, %v1294
          %v1487 = vmul.f32 %v1295, %v1295
          %v1488 = vmul.f32 %v1296, %v1296
          %v1489 = vmul.f32 %v1297, %v1297
          %v1490 = vmul.f32 %v1298, %v1298
          %v1491 = vmul.f32 %v1299, %v1299
          %v1492 = vmul.f32 %v1300, %v1300
          %v1493 = vmul.f32 %v1301, %v1301
          %v1494 = vmul.f32 %v1302, %v1302
          %v1495 = vmul.f32 %v1303, %v1303
          %v1496 = vmul.f32 %v1304, %v1304
          %v1497 = vmul.f32 %v1305, %v1305
          %v1498 = vmul.f32 %v1306, %v1306
          %v1499 = vmul.f32 %v1307, %v1307
          %v1500 = vmul.f32 %v1308, %v1308
          %v1501 = vmul.f32 %v1309, %v1309
          %v1502 = vmul.f32 %v1310, %v1310
          %v1503 = vmul.f32 %v1311, %v1311
          %v1504 = vmul.f32 %v1312, %v1312
          %v1505 = vmul.f32 %v1313, %v1313
          %v1506 = vmul.f32 %v1314, %v1314
          %v1507 = vmul.f32 %v1315, %v1315
          %v1508 = vmul.f32 %v1316, %v1316
          %v1509 = vmul.f32 %v1317, %v1317
          %v1510 = vmul.f32 %v1318, %v1318
          %v1511 = vmul.f32 %v1319, %v1319
          %v1512 = vmul.f32 %v1320, %v1320
          %v1513 = vmul.f32 %v1321, %v1321
          %v1514 = vmul.f32 %v1322, %v1322
          %v1515 = vmul.f32 %v1323, %v1323
          %v1516 = vmul.f32 %v1324, %v1324
          %v1517 = vmul.f32 %v1325, %v1325
          %v1518 = vmul.f32 %v1326, %v1326
          %v1519 = vmul.f32 %v1327, %v1327
          %v1520 = vmul.f32 %v1328, %v1328
          %v1521 = vmul.f32 %v1329, %v1329
          %v1522 = vmul.f32 %v1330, %v1330
          %v1523 = vmul.f32 %v1331, %v1331
          %v1524 = vmul.f32 %v1332, %v1332
          %v1525 = vmul.f32 %v1333, %v1333
          %v1526 = vmul.f32 %v1334, %v1334
          %v1527 = vmul.f32 %v1335, %v1335
          %v1528 = vmul.f32 %v1336, %v1336
          %v1529 = vmul.f32 %v1337, %v1337
          %v1530 = vmul.f32 %v1338, %v1338
          %v1531 = vmul.f32 %v1339, %v1339
          %v1532 = vmul.f32 %v1340, %v1340
          %v1533 = vmul.f32 %v1341, %v1341
          %v1534 = vmul.f32 %v1342, %v1342
          %v1535 = vmul.f32 %v1343, %v1343
          %v1536 = vmul.f32 %v1344, %v1344
          %v1537 = vmul.f32 %v1345, %v1345
          %v1538 = vmul.f32 %v1346, %v1346
          %v1539 = vmul.f32 %v1347, %v1347
          %v1540 = vmul.f32 %v1348, %v1348
          %v1541 = vmul.f32 %v1349, %v1349
          %v1542 = vmul.f32 %v1350, %v1350
          %v1543 = vmul.f32 %v1351, %v1351
          %v1544 = vmul.f32 %v1352, %v1352
          %v1545 = vmul.f32 %v1353, %v1353
          %v1546 = vmul.f32 %v1354, %v1354
          %v1547 = vmul.f32 %v1355, %v1355
          %v1548 = vmul.f32 %v1356, %v1356
          %v1549 = vmul.f32 %v1357, %v1357
          %v1550 = vmul.f32 %v1358, %v1358
          %v1551 = vmul.f32 %v1359, %v1359
          %v1552 = vmul.f32 %v1360, %v1360
          %v1553 = vmul.f32 %v1361, %v1361
          %v1554 = vmul.f32 %v1362, %v1362
          %v1555 = vmul.f32 %v1363, %v1363
          %v1556 = vmul.f32 %v1364, %v1364
          %v1557 = vmul.f32 %v1365, %v1365
          %v1558 = vmul.f32 %v1366, %v1366
          %v1559 = vmul.f32 %v1367, %v1367
          %v1560 = vmul.f32 %v1368, %v1368
          %v1561 = vmul.f32 %v1369, %v1369
          %v1562 = vmul.f32 %v1370, %v1370
          %v1563 = vmul.f32 %v1371, %v1371
          %v1564 = vmul.f32 %v1372, %v1372
          %v1565 = vmul.f32 %v1373, %v1373
          %v1566 = vmul.f32 %v1374, %v1374
          %v1567 = vmul.f32 %v1375, %v1375
          %v1568 = vmul.f32 %v1376, %v1376
          %v1569 = vmul.f32 %v1377, %v1377
          %v1570 = vadd.f32 %v1486, %v1487
          %v1571 = vadd.f32 %v1570, %v1488
          %v1572 = vadd.f32 %v1571, %v1489
          %v1573 = vadd.f32 %v1572, %v1490
          %v1574 = vadd.f32 %v1573, %v1491
          %v1575 = vsel %vm1211, %v1492, 0.0
          %v1576 = vadd.f32 %v1574, %v1575
          %1577 = vadd.xlane.f32.xlu0 %v1576
          %v1578 = vpop.xlane.xlu0 %1577
          %v1579 = vadd.f32 %v1493, %v1494
          %v1580 = vadd.f32 %v1579, %v1495
          %v1581 = vadd.f32 %v1580, %v1496
          %v1582 = vadd.f32 %v1581, %v1497
          %v1583 = vadd.f32 %v1582, %v1498
          %v1584 = vsel %vm1211, %v1499, 0.0
          %v1585 = vadd.f32 %v1583, %v1584
          %1586 = vadd.xlane.f32.xlu0 %v1585
          %v1587 = vpop.xlane.xlu0 %1586
          %v1588 = vadd.f32 %v1500, %v1501
          %v1589 = vadd.f32 %v1588, %v1502
          %v1590 = vadd.f32 %v1589, %v1503
          %v1591 = vadd.f32 %v1590, %v1504
          %v1592 = vadd.f32 %v1591, %v1505
          %v1593 = vsel %vm1211, %v1506, 0.0
          %v1594 = vadd.f32 %v1592, %v1593
          %1595 = vadd.xlane.f32.xlu0 %v1594
          %v1596 = vpop.xlane.xlu0 %1595
          %v1597 = vadd.f32 %v1507, %v1508
          %v1598 = vadd.f32 %v1597, %v1509
          %v1599 = vadd.f32 %v1598, %v1510
          %v1600 = vadd.f32 %v1599, %v1511
          %v1601 = vadd.f32 %v1600, %v1512
          %v1602 = vsel %vm1211, %v1513, 0.0
          %v1603 = vadd.f32 %v1601, %v1602
          %1604 = vadd.xlane.f32.xlu0 %v1603
          %v1605 = vpop.xlane.xlu0 %1604
          %v1606 = vadd.f32 %v1514, %v1515
          %v1607 = vadd.f32 %v1606, %v1516
          %v1608 = vadd.f32 %v1607, %v1517
          %v1609 = vadd.f32 %v1608, %v1518
          %v1610 = vadd.f32 %v1609, %v1519
          %v1611 = vsel %vm1211, %v1520, 0.0
          %v1612 = vadd.f32 %v1610, %v1611
          %1613 = vadd.xlane.f32.xlu0 %v1612
          %v1614 = vpop.xlane.xlu0 %1613
          %v1615 = vadd.f32 %v1521, %v1522
          %v1616 = vadd.f32 %v1615, %v1523
          %v1617 = vadd.f32 %v1616, %v1524
          %v1618 = vadd.f32 %v1617, %v1525
          %v1619 = vadd.f32 %v1618, %v1526
          %v1620 = vsel %vm1211, %v1527, 0.0
          %v1621 = vadd.f32 %v1619, %v1620
          %1622 = vadd.xlane.f32.xlu0 %v1621
          %v1623 = vpop.xlane.xlu0 %1622
          %v1624 = vadd.f32 %v1528, %v1529
          %v1625 = vadd.f32 %v1624, %v1530
          %v1626 = vadd.f32 %v1625, %v1531
          %v1627 = vadd.f32 %v1626, %v1532
          %v1628 = vadd.f32 %v1627, %v1533
          %v1629 = vsel %vm1211, %v1534, 0.0
          %v1630 = vadd.f32 %v1628, %v1629
          %1631 = vadd.xlane.f32.xlu0 %v1630
          %v1632 = vpop.xlane.xlu0 %1631
          %v1633 = vadd.f32 %v1535, %v1536
          %v1634 = vadd.f32 %v1633, %v1537
          %v1635 = vadd.f32 %v1634, %v1538
          %v1636 = vadd.f32 %v1635, %v1539
          %v1637 = vadd.f32 %v1636, %v1540
          %v1638 = vsel %vm1211, %v1541, 0.0
          %v1639 = vadd.f32 %v1637, %v1638
          %1640 = vadd.xlane.f32.xlu0 %v1639
          %v1641 = vpop.xlane.xlu0 %1640
          %v1642 = vadd.f32 %v1542, %v1543
          %v1643 = vadd.f32 %v1642, %v1544
          %v1644 = vadd.f32 %v1643, %v1545
          %v1645 = vadd.f32 %v1644, %v1546
          %v1646 = vadd.f32 %v1645, %v1547
          %v1647 = vsel %vm1211, %v1548, 0.0
          %v1648 = vadd.f32 %v1646, %v1647
          %1649 = vadd.xlane.f32.xlu0 %v1648
          %v1650 = vpop.xlane.xlu0 %1649
          %v1651 = vadd.f32 %v1549, %v1550
          %v1652 = vadd.f32 %v1651, %v1551
          %v1653 = vadd.f32 %v1652, %v1552
          %v1654 = vadd.f32 %v1653, %v1553
          %v1655 = vadd.f32 %v1654, %v1554
          %v1656 = vsel %vm1211, %v1555, 0.0
          %v1657 = vadd.f32 %v1655, %v1656
          %1658 = vadd.xlane.f32.xlu0 %v1657
          %v1659 = vpop.xlane.xlu0 %1658
          %v1660 = vadd.f32 %v1556, %v1557
          %v1661 = vadd.f32 %v1660, %v1558
          %v1662 = vadd.f32 %v1661, %v1559
          %v1663 = vadd.f32 %v1662, %v1560
          %v1664 = vadd.f32 %v1663, %v1561
          %v1665 = vsel %vm1211, %v1562, 0.0
          %v1666 = vadd.f32 %v1664, %v1665
          %1667 = vadd.xlane.f32.xlu0 %v1666
          %v1668 = vpop.xlane.xlu0 %1667
          %v1669 = vadd.f32 %v1563, %v1564
          %v1670 = vadd.f32 %v1669, %v1565
          %v1671 = vadd.f32 %v1670, %v1566
          %v1672 = vadd.f32 %v1671, %v1567
          %v1673 = vadd.f32 %v1672, %v1568
          %v1674 = vsel %vm1211, %v1569, 0.0
          %v1675 = vadd.f32 %v1673, %v1674
          %1676 = vadd.xlane.f32.xlu0 %v1675
          %v1677 = vpop.xlane.xlu0 %1676
          %v1678 = vmul.f32 %v1386, 0.0012755102
          %v1679 = vmul.f32 %v1395, 0.0012755102
          %v1680 = vmul.f32 %v1404, 0.0012755102
          %v1681 = vmul.f32 %v1413, 0.0012755102
          %v1682 = vmul.f32 %v1422, 0.0012755102
          %v1683 = vmul.f32 %v1431, 0.0012755102
          %v1684 = vmul.f32 %v1440, 0.0012755102
          %v1685 = vmul.f32 %v1449, 0.0012755102
          %v1686 = vmul.f32 %v1458, 0.0012755102
          %v1687 = vmul.f32 %v1467, 0.0012755102
          %v1688 = vmul.f32 %v1476, 0.0012755102
          %v1689 = vmul.f32 %v1485, 0.0012755102
          %v1690 = vmul.f32 %v1578, 0.0012755102
          %v1691 = vmul.f32 %v1587, 0.0012755102
          %v1692 = vmul.f32 %v1596, 0.0012755102
          %v1693 = vmul.f32 %v1605, 0.0012755102
          %v1694 = vmul.f32 %v1614, 0.0012755102
          %v1695 = vmul.f32 %v1623, 0.0012755102
          %v1696 = vmul.f32 %v1632, 0.0012755102
          %v1697 = vmul.f32 %v1641, 0.0012755102
          %v1698 = vmul.f32 %v1650, 0.0012755102
          %v1699 = vmul.f32 %v1659, 0.0012755102
          %v1700 = vmul.f32 %v1668, 0.0012755102
          %v1701 = vmul.f32 %v1677, 0.0012755102
          %v1702 = vmul.f32 %v1678, %v1678
          %v1703 = vmul.f32 %v1679, %v1679
          %v1704 = vmul.f32 %v1680, %v1680
          %v1705 = vmul.f32 %v1681, %v1681
          %v1706 = vmul.f32 %v1682, %v1682
          %v1707 = vmul.f32 %v1683, %v1683
          %v1708 = vmul.f32 %v1684, %v1684
          %v1709 = vmul.f32 %v1685, %v1685
          %v1710 = vmul.f32 %v1686, %v1686
          %v1711 = vmul.f32 %v1687, %v1687
          %v1712 = vmul.f32 %v1688, %v1688
          %v1713 = vmul.f32 %v1689, %v1689
          %v1714 = vsub.f32 %v1690, %v1702
          %v1715 = vsub.f32 %v1691, %v1703
          %v1716 = vsub.f32 %v1692, %v1704
          %v1717 = vsub.f32 %v1693, %v1705
          %v1718 = vsub.f32 %v1694, %v1706
          %v1719 = vsub.f32 %v1695, %v1707
          %v1720 = vsub.f32 %v1696, %v1708
          %v1721 = vsub.f32 %v1697, %v1709
          %v1722 = vsub.f32 %v1698, %v1710
          %v1723 = vsub.f32 %v1699, %v1711
          %v1724 = vsub.f32 %v1700, %v1712
          %v1725 = vsub.f32 %v1701, %v1713
          %v1726 = vadd.f32 %v1714, 0.001
          %v1727 = vadd.f32 %v1715, 0.001
          %v1728 = vadd.f32 %v1716, 0.001
          %v1729 = vadd.f32 %v1717, 0.001
          %v1730 = vadd.f32 %v1718, 0.001
          %v1731 = vadd.f32 %v1719, 0.001
          %v1732 = vadd.f32 %v1720, 0.001
          %v1733 = vadd.f32 %v1721, 0.001
          %v1734 = vadd.f32 %v1722, 0.001
          %v1735 = vadd.f32 %v1723, 0.001
          %v1736 = vadd.f32 %v1724, 0.001
          %v1737 = vadd.f32 %v1725, 0.001
          %v1738 = vrsqrt.pop %v1726
          %v1739 = vrsqrt.pop %v1727
          %v1740 = vrsqrt.pop %v1728
          %v1741 = vrsqrt.pop %v1729
          %v1742 = vrsqrt.pop %v1730
          %v1743 = vrsqrt.pop %v1731
          %v1744 = vrsqrt.pop %v1732
          %v1745 = vrsqrt.pop %v1733
          %v1746 = vrsqrt.pop %v1734
          %v1747 = vrsqrt.pop %v1735
          %v1748 = vrsqrt.pop %v1736
          %v1749 = vrsqrt.pop %v1737
          %v1750 = vld [vmem:[%s2] sm:$0xff]
          %v1751 = vld [vmem:[%s2 + $0x8] sm:$0xff]
          %v1752 = vld [vmem:[%s2 + $0x10] sm:$0xff]
          %v1753 = vld [vmem:[%s2 + $0x18] sm:$0xff]
          %v1754 = vld [vmem:[%s2 + $0x20] sm:$0xff]
          %v1755 = vld [vmem:[%s2 + $0x28] sm:$0xff]
          %v1756 = vld [vmem:[%s2 + $0x30] sm:$0xff]
          %v1757 = vld [vmem:[%s2 + $0x38] sm:$0xff]
          %v1758 = vld [vmem:[%s2 + $0x40] sm:$0xff]
          %v1759 = vld [vmem:[%s2 + $0x48] sm:$0xff]
          %v1760 = vld [vmem:[%s2 + $0x50] sm:$0xff]
          %v1761 = vld [vmem:[%s2 + $0x58] sm:$0xff]
          %v1762 = vmul.f32 %v1738, %v1750
          %v1763 = vmul.f32 %v1739, %v1751
          %v1764 = vmul.f32 %v1740, %v1752
          %v1765 = vmul.f32 %v1741, %v1753
          %v1766 = vmul.f32 %v1742, %v1754
          %v1767 = vmul.f32 %v1743, %v1755
          %v1768 = vmul.f32 %v1744, %v1756
          %v1769 = vmul.f32 %v1745, %v1757
          %v1770 = vmul.f32 %v1746, %v1758
          %v1771 = vmul.f32 %v1747, %v1759
          %v1772 = vmul.f32 %v1748, %v1760
          %v1773 = vmul.f32 %v1749, %v1761
          %v1774 = vld [vmem:[%s3] sm:$0xff]
          %v1775 = vld [vmem:[%s3 + $0x8] sm:$0xff]
          %v1776 = vld [vmem:[%s3 + $0x10] sm:$0xff]
          %v1777 = vld [vmem:[%s3 + $0x18] sm:$0xff]
          %v1778 = vld [vmem:[%s3 + $0x20] sm:$0xff]
          %v1779 = vld [vmem:[%s3 + $0x28] sm:$0xff]
          %v1780 = vld [vmem:[%s3 + $0x30] sm:$0xff]
          %v1781 = vld [vmem:[%s3 + $0x38] sm:$0xff]
          %v1782 = vld [vmem:[%s3 + $0x40] sm:$0xff]
          %v1783 = vld [vmem:[%s3 + $0x48] sm:$0xff]
          %v1784 = vld [vmem:[%s3 + $0x50] sm:$0xff]
          %v1785 = vld [vmem:[%s3 + $0x58] sm:$0xff]
          %v1786 = vmul.f32 %v1678, %v1762
          %v1787 = vmul.f32 %v1679, %v1763
          %v1788 = vmul.f32 %v1680, %v1764
          %v1789 = vmul.f32 %v1681, %v1765
          %v1790 = vmul.f32 %v1682, %v1766
          %v1791 = vmul.f32 %v1683, %v1767
          %v1792 = vmul.f32 %v1684, %v1768
          %v1793 = vmul.f32 %v1685, %v1769
          %v1794 = vmul.f32 %v1686, %v1770
          %v1795 = vmul.f32 %v1687, %v1771
          %v1796 = vmul.f32 %v1688, %v1772
          %v1797 = vmul.f32 %v1689, %v1773
          %v1798 = vsub.f32 %v1774, %v1786
          %v1799 = vsub.f32 %v1775, %v1787
          %v1800 = vsub.f32 %v1776, %v1788
          %v1801 = vsub.f32 %v1777, %v1789
          %v1802 = vsub.f32 %v1778, %v1790
          %v1803 = vsub.f32 %v1779, %v1791
          %v1804 = vsub.f32 %v1780, %v1792
          %v1805 = vsub.f32 %v1781, %v1793
          %v1806 = vsub.f32 %v1782, %v1794
          %v1807 = vsub.f32 %v1783, %v1795
          %v1808 = vsub.f32 %v1784, %v1796
          %v1809 = vsub.f32 %v1785, %v1797
          %1811 = vset.pattern.permute.xlu0 0
          %1812 = vperm.xlu0 %1811, %v1762
          %v1813 = vpop.permute.xlu0 %1812
          %1816 = vset.pattern.permute.xlu0 0
          %1817 = vperm.xlu0 %1816, %v1763
          %v1818 = vpop.permute.xlu0 %1817
          %1821 = vset.pattern.permute.xlu0 0
          %1822 = vperm.xlu0 %1821, %v1764
          %v1823 = vpop.permute.xlu0 %1822
          %1826 = vset.pattern.permute.xlu0 0
          %1827 = vperm.xlu0 %1826, %v1765
          %v1828 = vpop.permute.xlu0 %1827
          %1831 = vset.pattern.permute.xlu0 0
          %1832 = vperm.xlu0 %1831, %v1766
          %v1833 = vpop.permute.xlu0 %1832
          %1836 = vset.pattern.permute.xlu0 0
          %1837 = vperm.xlu0 %1836, %v1767
          %v1838 = vpop.permute.xlu0 %1837
          %1841 = vset.pattern.permute.xlu0 0
          %1842 = vperm.xlu0 %1841, %v1768
          %v1843 = vpop.permute.xlu0 %1842
          %1846 = vset.pattern.permute.xlu0 0
          %1847 = vperm.xlu0 %1846, %v1769
          %v1848 = vpop.permute.xlu0 %1847
          %1851 = vset.pattern.permute.xlu0 0
          %1852 = vperm.xlu0 %1851, %v1770
          %v1853 = vpop.permute.xlu0 %1852
          %1856 = vset.pattern.permute.xlu0 0
          %1857 = vperm.xlu0 %1856, %v1771
          %v1858 = vpop.permute.xlu0 %1857
          %1861 = vset.pattern.permute.xlu0 0
          %1862 = vperm.xlu0 %1861, %v1772
          %v1863 = vpop.permute.xlu0 %1862
          %1866 = vset.pattern.permute.xlu0 0
          %1867 = vperm.xlu0 %1866, %v1773
          %v1868 = vpop.permute.xlu0 %1867
          %v1870 = vmul.f32 %v1294, %v1813
          %v1871 = vmul.f32 %v1295, %v1813
          %v1872 = vmul.f32 %v1296, %v1813
          %v1873 = vmul.f32 %v1297, %v1813
          %v1874 = vmul.f32 %v1298, %v1813
          %v1875 = vmul.f32 %v1299, %v1813
          %v1876 = vmul.f32 %v1300, %v1813
          %v1877 = vmul.f32 %v1301, %v1818
          %v1878 = vmul.f32 %v1302, %v1818
          %v1879 = vmul.f32 %v1303, %v1818
          %v1880 = vmul.f32 %v1304, %v1818
          %v1881 = vmul.f32 %v1305, %v1818
          %v1882 = vmul.f32 %v1306, %v1818
          %v1883 = vmul.f32 %v1307, %v1818
          %v1884 = vmul.f32 %v1308, %v1823
          %v1885 = vmul.f32 %v1309, %v1823
          %v1886 = vmul.f32 %v1310, %v1823
          %v1887 = vmul.f32 %v1311, %v1823
          %v1888 = vmul.f32 %v1312, %v1823
          %v1889 = vmul.f32 %v1313, %v1823
          %v1890 = vmul.f32 %v1314, %v1823
          %v1891 = vmul.f32 %v1315, %v1828
          %v1892 = vmul.f32 %v1316, %v1828
          %v1893 = vmul.f32 %v1317, %v1828
          %v1894 = vmul.f32 %v1318, %v1828
          %v1895 = vmul.f32 %v1319, %v1828
          %v1896 = vmul.f32 %v1320, %v1828
          %v1897 = vmul.f32 %v1321, %v1828
          %v1898 = vmul.f32 %v1322, %v1833
          %v1899 = vmul.f32 %v1323, %v1833
          %v1900 = vmul.f32 %v1324, %v1833
          %v1901 = vmul.f32 %v1325, %v1833
          %v1902 = vmul.f32 %v1326, %v1833
          %v1903 = vmul.f32 %v1327, %v1833
          %v1904 = vmul.f32 %v1328, %v1833
          %v1905 = vmul.f32 %v1329, %v1838
          %v1906 = vmul.f32 %v1330, %v1838
          %v1907 = vmul.f32 %v1331, %v1838
          %v1908 = vmul.f32 %v1332, %v1838
          %v1909 = vmul.f32 %v1333, %v1838
          %v1910 = vmul.f32 %v1334, %v1838
          %v1911 = vmul.f32 %v1335, %v1838
          %v1912 = vmul.f32 %v1336, %v1843
          %v1913 = vmul.f32 %v1337, %v1843
          %v1914 = vmul.f32 %v1338, %v1843
          %v1915 = vmul.f32 %v1339, %v1843
          %v1916 = vmul.f32 %v1340, %v1843
          %v1917 = vmul.f32 %v1341, %v1843
          %v1918 = vmul.f32 %v1342, %v1843
          %v1919 = vmul.f32 %v1343, %v1848
          %v1920 = vmul.f32 %v1344, %v1848
          %v1921 = vmul.f32 %v1345, %v1848
          %v1922 = vmul.f32 %v1346, %v1848
          %v1923 = vmul.f32 %v1347, %v1848
          %v1924 = vmul.f32 %v1348, %v1848
          %v1925 = vmul.f32 %v1349, %v1848
          %v1926 = vmul.f32 %v1350, %v1853
          %v1927 = vmul.f32 %v1351, %v1853
          %v1928 = vmul.f32 %v1352, %v1853
          %v1929 = vmul.f32 %v1353, %v1853
          %v1930 = vmul.f32 %v1354, %v1853
          %v1931 = vmul.f32 %v1355, %v1853
          %v1932 = vmul.f32 %v1356, %v1853
          %v1933 = vmul.f32 %v1357, %v1858
          %v1934 = vmul.f32 %v1358, %v1858
          %v1935 = vmul.f32 %v1359, %v1858
          %v1936 = vmul.f32 %v1360, %v1858
          %v1937 = vmul.f32 %v1361, %v1858
          %v1938 = vmul.f32 %v1362, %v1858
          %v1939 = vmul.f32 %v1363, %v1858
          %v1940 = vmul.f32 %v1364, %v1863
          %v1941 = vmul.f32 %v1365, %v1863
          %v1942 = vmul.f32 %v1366, %v1863
          %v1943 = vmul.f32 %v1367, %v1863
          %v1944 = vmul.f32 %v1368, %v1863
          %v1945 = vmul.f32 %v1369, %v1863
          %v1946 = vmul.f32 %v1370, %v1863
          %v1947 = vmul.f32 %v1371, %v1868
          %v1948 = vmul.f32 %v1372, %v1868
          %v1949 = vmul.f32 %v1373, %v1868
          %v1950 = vmul.f32 %v1374, %v1868
          %v1951 = vmul.f32 %v1375, %v1868
          %v1952 = vmul.f32 %v1376, %v1868
          %v1953 = vmul.f32 %v1377, %v1868
          %1955 = vset.pattern.permute.xlu0 0
          %1956 = vperm.xlu0 %1955, %v1798
          %v1957 = vpop.permute.xlu0 %1956
          %1960 = vset.pattern.permute.xlu0 0
          %1961 = vperm.xlu0 %1960, %v1799
          %v1962 = vpop.permute.xlu0 %1961
          %1965 = vset.pattern.permute.xlu0 0
          %1966 = vperm.xlu0 %1965, %v1800
          %v1967 = vpop.permute.xlu0 %1966
          %1970 = vset.pattern.permute.xlu0 0
          %1971 = vperm.xlu0 %1970, %v1801
          %v1972 = vpop.permute.xlu0 %1971
          %1975 = vset.pattern.permute.xlu0 0
          %1976 = vperm.xlu0 %1975, %v1802
          %v1977 = vpop.permute.xlu0 %1976
          %1980 = vset.pattern.permute.xlu0 0
          %1981 = vperm.xlu0 %1980, %v1803
          %v1982 = vpop.permute.xlu0 %1981
          %1985 = vset.pattern.permute.xlu0 0
          %1986 = vperm.xlu0 %1985, %v1804
          %v1987 = vpop.permute.xlu0 %1986
          %1990 = vset.pattern.permute.xlu0 0
          %1991 = vperm.xlu0 %1990, %v1805
          %v1992 = vpop.permute.xlu0 %1991
          %1995 = vset.pattern.permute.xlu0 0
          %1996 = vperm.xlu0 %1995, %v1806
          %v1997 = vpop.permute.xlu0 %1996
          %2000 = vset.pattern.permute.xlu0 0
          %2001 = vperm.xlu0 %2000, %v1807
          %v2002 = vpop.permute.xlu0 %2001
          %2005 = vset.pattern.permute.xlu0 0
          %2006 = vperm.xlu0 %2005, %v1808
          %v2007 = vpop.permute.xlu0 %2006
          %2010 = vset.pattern.permute.xlu0 0
          %2011 = vperm.xlu0 %2010, %v1809
          %v2012 = vpop.permute.xlu0 %2011
          %v2014 = vadd.f32 %v1870, %v1957
          %v2015 = vadd.f32 %v1871, %v1957
          %v2016 = vadd.f32 %v1872, %v1957
          %v2017 = vadd.f32 %v1873, %v1957
          %v2018 = vadd.f32 %v1874, %v1957
          %v2019 = vadd.f32 %v1875, %v1957
          %v2020 = vadd.f32 %v1876, %v1957
          %v2021 = vadd.f32 %v1877, %v1962
          %v2022 = vadd.f32 %v1878, %v1962
          %v2023 = vadd.f32 %v1879, %v1962
          %v2024 = vadd.f32 %v1880, %v1962
          %v2025 = vadd.f32 %v1881, %v1962
          %v2026 = vadd.f32 %v1882, %v1962
          %v2027 = vadd.f32 %v1883, %v1962
          %v2028 = vadd.f32 %v1884, %v1967
          %v2029 = vadd.f32 %v1885, %v1967
          %v2030 = vadd.f32 %v1886, %v1967
          %v2031 = vadd.f32 %v1887, %v1967
          %v2032 = vadd.f32 %v1888, %v1967
          %v2033 = vadd.f32 %v1889, %v1967
          %v2034 = vadd.f32 %v1890, %v1967
          %v2035 = vadd.f32 %v1891, %v1972
          %v2036 = vadd.f32 %v1892, %v1972
          %v2037 = vadd.f32 %v1893, %v1972
          %v2038 = vadd.f32 %v1894, %v1972
          %v2039 = vadd.f32 %v1895, %v1972
          %v2040 = vadd.f32 %v1896, %v1972
          %v2041 = vadd.f32 %v1897, %v1972
          %v2042 = vadd.f32 %v1898, %v1977
          %v2043 = vadd.f32 %v1899, %v1977
          %v2044 = vadd.f32 %v1900, %v1977
          %v2045 = vadd.f32 %v1901, %v1977
          %v2046 = vadd.f32 %v1902, %v1977
          %v2047 = vadd.f32 %v1903, %v1977
          %v2048 = vadd.f32 %v1904, %v1977
          %v2049 = vadd.f32 %v1905, %v1982
          %v2050 = vadd.f32 %v1906, %v1982
          %v2051 = vadd.f32 %v1907, %v1982
          %v2052 = vadd.f32 %v1908, %v1982
          %v2053 = vadd.f32 %v1909, %v1982
          %v2054 = vadd.f32 %v1910, %v1982
          %v2055 = vadd.f32 %v1911, %v1982
          %v2056 = vadd.f32 %v1912, %v1987
          %v2057 = vadd.f32 %v1913, %v1987
          %v2058 = vadd.f32 %v1914, %v1987
          %v2059 = vadd.f32 %v1915, %v1987
          %v2060 = vadd.f32 %v1916, %v1987
          %v2061 = vadd.f32 %v1917, %v1987
          %v2062 = vadd.f32 %v1918, %v1987
          %v2063 = vadd.f32 %v1919, %v1992
          %v2064 = vadd.f32 %v1920, %v1992
          %v2065 = vadd.f32 %v1921, %v1992
          %v2066 = vadd.f32 %v1922, %v1992
          %v2067 = vadd.f32 %v1923, %v1992
          %v2068 = vadd.f32 %v1924, %v1992
          %v2069 = vadd.f32 %v1925, %v1992
          %v2070 = vadd.f32 %v1926, %v1997
          %v2071 = vadd.f32 %v1927, %v1997
          %v2072 = vadd.f32 %v1928, %v1997
          %v2073 = vadd.f32 %v1929, %v1997
          %v2074 = vadd.f32 %v1930, %v1997
          %v2075 = vadd.f32 %v1931, %v1997
          %v2076 = vadd.f32 %v1932, %v1997
          %v2077 = vadd.f32 %v1933, %v2002
          %v2078 = vadd.f32 %v1934, %v2002
          %v2079 = vadd.f32 %v1935, %v2002
          %v2080 = vadd.f32 %v1936, %v2002
          %v2081 = vadd.f32 %v1937, %v2002
          %v2082 = vadd.f32 %v1938, %v2002
          %v2083 = vadd.f32 %v1939, %v2002
          %v2084 = vadd.f32 %v1940, %v2007
          %v2085 = vadd.f32 %v1941, %v2007
          %v2086 = vadd.f32 %v1942, %v2007
          %v2087 = vadd.f32 %v1943, %v2007
          %v2088 = vadd.f32 %v1944, %v2007
          %v2089 = vadd.f32 %v1945, %v2007
          %v2090 = vadd.f32 %v1946, %v2007
          %v2091 = vadd.f32 %v1947, %v2012
          %v2092 = vadd.f32 %v1948, %v2012
          %v2093 = vadd.f32 %v1949, %v2012
          %v2094 = vadd.f32 %v1950, %v2012
          %v2095 = vadd.f32 %v1951, %v2012
          %v2096 = vadd.f32 %v1952, %v2012
          %v2097 = vadd.f32 %v1953, %v2012
          %2098 = vst [vmem:[#allocation3] sm:$0xff] %v2014
          %2099 = vst [vmem:[#allocation3 + $0x8] sm:$0xff] %v2015
          %2100 = vst [vmem:[#allocation3 + $0x10] sm:$0xff] %v2016
          %2101 = vst [vmem:[#allocation3 + $0x18] sm:$0xff] %v2017
          %2102 = vst [vmem:[#allocation3 + $0x20] sm:$0xff] %v2018
          %2103 = vst [vmem:[#allocation3 + $0x28] sm:$0xff] %v2019
          %2104 = vst.msk [vmem:[#allocation3 + $0x30] sm:$0xff] %vm1211, %v2020
          %2105 = vst [vmem:[#allocation3 + $0x38] sm:$0xff] %v2021
          %2106 = vst [vmem:[#allocation3 + $0x40] sm:$0xff] %v2022
          %2107 = vst [vmem:[#allocation3 + $0x48] sm:$0xff] %v2023
          %2108 = vst [vmem:[#allocation3 + $0x50] sm:$0xff] %v2024
          %2109 = vst [vmem:[#allocation3 + $0x58] sm:$0xff] %v2025
          %2110 = vst [vmem:[#allocation3 + $0x60] sm:$0xff] %v2026
          %2111 = vst.msk [vmem:[#allocation3 + $0x68] sm:$0xff] %vm1211, %v2027
          %2112 = vst [vmem:[#allocation3 + $0x70] sm:$0xff] %v2028
          %2113 = vst [vmem:[#allocation3 + $0x78] sm:$0xff] %v2029
          %2114 = vst [vmem:[#allocation3 + $0x80] sm:$0xff] %v2030
          %2115 = vst [vmem:[#allocation3 + $0x88] sm:$0xff] %v2031
          %2116 = vst [vmem:[#allocation3 + $0x90] sm:$0xff] %v2032
          %2117 = vst [vmem:[#allocation3 + $0x98] sm:$0xff] %v2033
          %2118 = vst.msk [vmem:[#allocation3 + $0xa0] sm:$0xff] %vm1211, %v2034
          %2119 = vst [vmem:[#allocation3 + $0xa8] sm:$0xff] %v2035
          %2120 = vst [vmem:[#allocation3 + $0xb0] sm:$0xff] %v2036
          %2121 = vst [vmem:[#allocation3 + $0xb8] sm:$0xff] %v2037
          %2122 = vst [vmem:[#allocation3 + $0xc0] sm:$0xff] %v2038
          %2123 = vst [vmem:[#allocation3 + $0xc8] sm:$0xff] %v2039
          %2124 = vst [vmem:[#allocation3 + $0xd0] sm:$0xff] %v2040
          %2125 = vst.msk [vmem:[#allocation3 + $0xd8] sm:$0xff] %vm1211, %v2041
          %2126 = vst [vmem:[#allocation3 + $0xe0] sm:$0xff] %v2042
          %2127 = vst [vmem:[#allocation3 + $0xe8] sm:$0xff] %v2043
          %2128 = vst [vmem:[#allocation3 + $0xf0] sm:$0xff] %v2044
          %2129 = vst [vmem:[#allocation3 + $0xf8] sm:$0xff] %v2045
          %2130 = vst [vmem:[#allocation3 + $0x100] sm:$0xff] %v2046
          %2131 = vst [vmem:[#allocation3 + $0x108] sm:$0xff] %v2047
          %2132 = vst.msk [vmem:[#allocation3 + $0x110] sm:$0xff] %vm1211, %v2048
          %2133 = vst [vmem:[#allocation3 + $0x118] sm:$0xff] %v2049
          %2134 = vst [vmem:[#allocation3 + $0x120] sm:$0xff] %v2050
          %2135 = vst [vmem:[#allocation3 + $0x128] sm:$0xff] %v2051
          %2136 = vst [vmem:[#allocation3 + $0x130] sm:$0xff] %v2052
          %2137 = vst [vmem:[#allocation3 + $0x138] sm:$0xff] %v2053
          %2138 = vst [vmem:[#allocation3 + $0x140] sm:$0xff] %v2054
          %2139 = vst.msk [vmem:[#allocation3 + $0x148] sm:$0xff] %vm1211, %v2055
          %2140 = vst [vmem:[#allocation3 + $0x150] sm:$0xff] %v2056
          %2141 = vst [vmem:[#allocation3 + $0x158] sm:$0xff] %v2057
          %2142 = vst [vmem:[#allocation3 + $0x160] sm:$0xff] %v2058
          %2143 = vst [vmem:[#allocation3 + $0x168] sm:$0xff] %v2059
          %2144 = vst [vmem:[#allocation3 + $0x170] sm:$0xff] %v2060
          %2145 = vst [vmem:[#allocation3 + $0x178] sm:$0xff] %v2061
          %2146 = vst.msk [vmem:[#allocation3 + $0x180] sm:$0xff] %vm1211, %v2062
          %2147 = vst [vmem:[#allocation3 + $0x188] sm:$0xff] %v2063
          %2148 = vst [vmem:[#allocation3 + $0x190] sm:$0xff] %v2064
          %2149 = vst [vmem:[#allocation3 + $0x198] sm:$0xff] %v2065
          %2150 = vst [vmem:[#allocation3 + $0x1a0] sm:$0xff] %v2066
          %2151 = vst [vmem:[#allocation3 + $0x1a8] sm:$0xff] %v2067
          %2152 = vst [vmem:[#allocation3 + $0x1b0] sm:$0xff] %v2068
          %2153 = vst.msk [vmem:[#allocation3 + $0x1b8] sm:$0xff] %vm1211, %v2069
          %2154 = vst [vmem:[#allocation3 + $0x1c0] sm:$0xff] %v2070
          %2155 = vst [vmem:[#allocation3 + $0x1c8] sm:$0xff] %v2071
          %2156 = vst [vmem:[#allocation3 + $0x1d0] sm:$0xff] %v2072
          %2157 = vst [vmem:[#allocation3 + $0x1d8] sm:$0xff] %v2073
          %2158 = vst [vmem:[#allocation3 + $0x1e0] sm:$0xff] %v2074
          %2159 = vst [vmem:[#allocation3 + $0x1e8] sm:$0xff] %v2075
          %2160 = vst.msk [vmem:[#allocation3 + $0x1f0] sm:$0xff] %vm1211, %v2076
          %2161 = vst [vmem:[#allocation3 + $0x1f8] sm:$0xff] %v2077
          %2162 = vst [vmem:[#allocation3 + $0x200] sm:$0xff] %v2078
          %2163 = vst [vmem:[#allocation3 + $0x208] sm:$0xff] %v2079
          %2164 = vst [vmem:[#allocation3 + $0x210] sm:$0xff] %v2080
          %2165 = vst [vmem:[#allocation3 + $0x218] sm:$0xff] %v2081
          %2166 = vst [vmem:[#allocation3 + $0x220] sm:$0xff] %v2082
          %2167 = vst.msk [vmem:[#allocation3 + $0x228] sm:$0xff] %vm1211, %v2083
          %2168 = vst [vmem:[#allocation3 + $0x230] sm:$0xff] %v2084
          %2169 = vst [vmem:[#allocation3 + $0x238] sm:$0xff] %v2085
          %2170 = vst [vmem:[#allocation3 + $0x240] sm:$0xff] %v2086
          %2171 = vst [vmem:[#allocation3 + $0x248] sm:$0xff] %v2087
          %2172 = vst [vmem:[#allocation3 + $0x250] sm:$0xff] %v2088
          %2173 = vst [vmem:[#allocation3 + $0x258] sm:$0xff] %v2089
          %2174 = vst.msk [vmem:[#allocation3 + $0x260] sm:$0xff] %vm1211, %v2090
          %2175 = vst [vmem:[#allocation3 + $0x268] sm:$0xff] %v2091
          %2176 = vst [vmem:[#allocation3 + $0x270] sm:$0xff] %v2092
          %2177 = vst [vmem:[#allocation3 + $0x278] sm:$0xff] %v2093
          %2178 = vst [vmem:[#allocation3 + $0x280] sm:$0xff] %v2094
          %2179 = vst [vmem:[#allocation3 + $0x288] sm:$0xff] %v2095
          %2180 = vst [vmem:[#allocation3 + $0x290] sm:$0xff] %v2096
          %2181 = vst.msk [vmem:[#allocation3 + $0x298] sm:$0xff] %vm1211, %v2097
        $region82: #{tpu_custom_call.1} parent=69 // pred_fallthru
          _
        // Predicated region
        $region83: #{tpu_custom_call.1} parent=69 // pred_check
          %p2182 = pneg %p123
        $region84: #{tpu_custom_call.1} parent=69 // pred_check_branch
          %2184 = sbr.rel (%p2182) target = $region86
        $region85: #{tpu_custom_call.1} parent=69 // pred_region
          %s2186 = ssub.s32 10752, 10752
          %2187 = vsyncadd [#allocation4], %s2186
          %s2188 = sshll.u32 [#allocation3], 4
          %s2189 = int_to_ptr.vmem [resolvable:$true] %s2188
          %2194 = dma.vmem_to_hbm [thread:$0]  %s2189, 10752, %s4, [#allocation4], 896, 896, 56
        $region86: #{tpu_custom_call.1} parent=69 // pred_fallthru
          _
        // Predicated region
        $region87: #{tpu_custom_call.1} parent=69 // pred_check
          %p2195 = pneg %p123
        $region88: #{tpu_custom_call.1} parent=69 // pred_check_branch
          %2197 = sbr.rel (%p2195) target = $region90
        $region89: #{tpu_custom_call.1} parent=69 // pred_region
          %2198 = dma.done [#allocation4], 10752
        $region90: #{tpu_custom_call.1} parent=69 // pred_fallthru
          _
      $region70: #{tpu_custom_call.1} parent=5 // pred_fallthru
        _
      %p2199 = scmp.le.s32.totalorder 2, %s11
      // Predicated region
      $region91: #{tpu_custom_call.1} parent=5 // pred_check
        %p2200 = pneg %p2199
      $region92: #{tpu_custom_call.1} parent=5 // pred_check_branch
        %2202 = sbr.rel (%p2200) target = $region94
      $region93: #{tpu_custom_call.1} parent=5 // pred_region
        %s2203 = ssub.s32 %s11, 2
      $region94: #{tpu_custom_call.1} parent=5 // pred_fallthru
        _
    $region6: #{tpu_custom_call.1} parent=1 // loop_footer
      %s15 = sadd.s32 1, %s11
    $region7: #{tpu_custom_call.1} parent=1 // loop_footer_branch
      %10 = sbr.rel target = $region3
    $region8: #{tpu_custom_call.1} parent=1 // loop_exit
      _
    %2204 = vsyncpa [#allocation4], 1
    %s2205 = scalar_lea.sflag [#allocation4], 1
    %2206 = vsyncpa %s2205, 1

</llo_original>
